<compile_context>
chip_gen: v5e
topology: v5e:2x2
jax: 0.10.0
libtpu: 0.0.40
codegen_flags: <defaults>
</compile_context>

<pallas_src>
import functools

import jax
import jax.numpy as jnp
from jax.experimental import pallas as pl
from jax.experimental.pallas import tpu as pltpu

BN_EPS = 1e-5
SP_EPS = 1e-4      # ClippedSoftplus lower clamp
SP_THRESH = 20.0   # softplus threshold (PyTorch default)


def _prelu(x, alpha):
    return jnp.where(x >= 0, x, alpha * x)


def _bn_eval(x, gamma, beta, mean, var):
    return (x - mean) * jax.lax.rsqrt(var + BN_EPS) * gamma + beta


def _softplus(x):
    # softplus with PyTorch-style linear region above the threshold
    return jnp.where(x > SP_THRESH, x, jnp.log1p(jnp.exp(jnp.minimum(x, SP_THRESH))))


# ---------------------------------------------------------------------------
# Kernel: one grid step = (one block of cb chromosomes) x (one batch tile).
# Eval-mode BatchNorm (+ Linear bias) is folded into the weights host-side;
# PReLU alphas arrive packed as row 1 of p1/p0.  The block-diagonal stage-2 /
# head weights only ever exist in the VMEM scratch refs (never in HBM).
# ---------------------------------------------------------------------------
def chrom_decoder_kernel(x_ref, w1_ref, p1_ref, w0_ref, p0_ref, wh_ref, bh_ref,
                         o1_ref, o2_ref, o3_ref, w0bd_ref, whbd_ref):
    cb = w0_ref.shape[1] // 32          # chromosomes in this block
    cbn = o1_ref.shape[-1]              # cb * N (one head's lane width)
    n = cbn // cb                       # outputs per chromosome (uniform N)

    # --- expand compact weights into VMEM block diagonals (per grid step) ----
    # Static python loops -> a handful of small, statically-sliced VMEM copies
    # whose source/dest lane phases match (no lane rotates needed).
    w0bd_ref[...] = jnp.zeros_like(w0bd_ref)
    whbd_ref[...] = jnp.zeros_like(whbd_ref)
    for c in range(cb):
        w0bd_ref[c * 16:(c + 1) * 16, c * 32:(c + 1) * 32] = \
            w0_ref[:, c * 32:(c + 1) * 32]
        for hd in range(3):
            whbd_ref[c * 32:(c + 1) * 32,
                     hd * cbn + c * n:hd * cbn + (c + 1) * n] = \
                wh_ref[hd * 32:(hd + 1) * 32, c * n:(c + 1) * n]

    # --- stage 1: act1(bn1(decode1(x))) restricted to this block ------------
    h = jnp.dot(x_ref[...], w1_ref[...],
                preferred_element_type=jnp.float32) + p1_ref[0]
    h = _prelu(h, p1_ref[1])                              # (BT, 16*cb) f32

    # --- stage 2: cb x (Linear(16,32)+BN+PReLU) as one block-diag matmul ----
    h2 = jnp.dot(h.astype(w0bd_ref.dtype), w0bd_ref[...],
                 preferred_element_type=jnp.float32) + p0_ref[0]
    h2 = _prelu(h2, p0_ref[1])                            # (BT, 32*cb) f32

    # --- heads: 3*cb Linear(32,N) fused into one block-diag matmul ----------
    r = jnp.dot(h2.astype(whbd_ref.dtype), whbd_ref[...],
                preferred_element_type=jnp.float32) + bh_ref[0]

    o1_ref[...] = jnp.exp(r[:, :cbn])                                # Exp
    o2_ref[...] = jnp.maximum(_softplus(r[:, cbn:2 * cbn]), SP_EPS)  # ClippedSoftplus
    o3_ref[...] = r[:, 2 * cbn:]                                     # identity


# ---------------------------------------------------------------------------
# Host-side sizing helpers.
# ---------------------------------------------------------------------------
def _vmem_budget_bytes():
    """Generation-aware (per-step budget, vmem_limit_bytes), kept consistent."""
    cap = 64 << 20            # conservative (v7x-sized) default if query fails
    try:
        info = pltpu.get_tpu_info()
        cap = int(getattr(info, "vmem_capacity_bytes", cap) or cap)
    except Exception:
        pass
    budget = max(16 << 20, cap // 2 - (8 << 20))        # v7x: 24 MiB, v5e/v6e: 56 MiB
    limit = min(cap - (16 << 20), budget + (8 << 20))   # v7x: 32 MiB, v5e/v6e: 64 MiB
    return budget, int(limit)


def _choose_bt(batch):
    """Batch (M) tile: whole batch when small, else the largest nice divisor."""
    if batch <= 256:
        return batch
    for bt in (256, 128, 64, 32, 16, 8):
        if batch % bt == 0:
            return bt
    return batch


def _choose_cb(C, bt, L, N, stream_bytes, budget_bytes):
    """Chromosomes per grid step.

    Alignment invariants (never violated):
      * cb % 8 == 0         -> 16*cb >= 128: lane-dense stage-1 weight blocks
      * (cb * N) % 128 == 0 -> lane-dense output blocks, vreg-aligned head slices
    Within those, cb may only grow, and only while the per-step VMEM estimate
    stays inside the generation-aware budget, >= 2 grid steps remain
    (megacore sharding / pipelining) and no extra chromosome padding appears.
    """
    cb = 8
    while (cb * N) % 128 != 0:
        cb += 8

    def step_bytes(c):
        cbn = c * N
        dbl = (bt * L * stream_bytes              # x tile
               + L * 16 * c * stream_bytes        # folded decode1 slice
               + 2 * 16 * c * 4                   # [bias1; alpha1]
               + 16 * 32 * c * stream_bytes       # compact layer0 weights
               + 2 * 32 * c * 4                   # [bias0; alpha0]
               + 96 * cbn * stream_bytes          # compact head weights
               + 3 * cbn * 4                      # head bias
               + 3 * bt * cbn * 4)                # three output tiles
        scratch = (16 * c * 32 * c + 32 * c * 3 * cbn) * stream_bytes
        live = bt * (16 * c + 32 * c + 3 * cbn) * 4   # h, h2, r intermediates
        return 2 * dbl + scratch + live

    while True:
        nxt = 2 * cb
        if -(-C // nxt) < 2:                        # keep >= 2 grid steps
            break
        if -(-C // nxt) * nxt > -(-C // cb) * cb:   # no extra chromosome padding
            break
        if step_bytes(nxt) > budget_bytes:
            break
        cb = nxt
    return cb


# ---------------------------------------------------------------------------
# Host-side parameter preparation: BN folding, chromosome blocking, packing.
# ---------------------------------------------------------------------------
def prepare_kernel_params(params, cb, stream_dtype):
    """Fold BN, pad C to a multiple of cb, build compact lane-dense operands."""
    w1 = params["w1"]                                    # (C, L, 16)
    C, L, _ = w1.shape
    N = params["w21"].shape[-1]
    n_blocks = -(-C // cb)
    Cp = n_blocks * cb
    pad = Cp - C

    def pad_c(a):                                        # zero-pad leading chrom axis
        if pad == 0:
            return a
        return jnp.concatenate(
            [a, jnp.zeros((pad,) + a.shape[1:], a.dtype)], axis=0)

    # ---- stage 1: fold eval-mode BN1 (+ Linear bias) into decode1 ----
    s1 = params["bn1_g"] * jax.lax.rsqrt(params["bn1_v"] + BN_EPS)        # (C,1,16)
    w1f = pad_c(w1 * s1)                                                  # (Cp,L,16)
    b1f = pad_c((params["b1"] - params["bn1_m"]) * s1 + params["bn1_b"])  # (Cp,1,16)
    w1f = jnp.transpose(w1f, (1, 0, 2)).reshape(L, Cp * 16).astype(stream_dtype)
    a1v = jnp.broadcast_to(jnp.asarray(params["alpha1"], jnp.float32), (Cp * 16,))
    p1 = jnp.stack([b1f.reshape(Cp * 16), a1v], axis=0)                   # (2, Cp*16) f32

    # ---- stage 2: fold BN0 into Linear(16,32); compact (16, Cp*32) layout ----
    s0 = params["bn0_g"] * jax.lax.rsqrt(params["bn0_v"] + BN_EPS)        # (C,1,32)
    w0f = pad_c(params["w0"] * s0)                                        # (Cp,16,32)
    b0f = pad_c((params["b0"] - params["bn0_m"]) * s0 + params["bn0_b"])  # (Cp,1,32)
    a0 = pad_c(params["alpha0"])                                          # (Cp,1,1)
    w0c = jnp.transpose(w0f, (1, 0, 2)).reshape(16, Cp * 32).astype(stream_dtype)
    a0v = jnp.broadcast_to(a0.reshape(Cp, 1), (Cp, 32)).reshape(Cp * 32)
    p0 = jnp.stack([b0f.reshape(Cp * 32), a0v], axis=0)                   # (2, Cp*32) f32

    # ---- heads: compact (96, Cp*N) layout, row = head*32 + feat, col = chrom*N + out
    w21, w22, w23 = (pad_c(params[k]) for k in ("w21", "w22", "w23"))     # (Cp,32,N)
    b21, b22, b23 = (pad_c(params[k]) for k in ("b21", "b22", "b23"))     # (Cp,1,N)
    whc = jnp.stack([w21, w22, w23], axis=0)                              # (3,Cp,32,N)
    whc = jnp.transpose(whc, (0, 2, 1, 3)).reshape(96, Cp * N).astype(stream_dtype)
    bh = jnp.stack([b21, b22, b23], axis=0).reshape(3, n_blocks, cb, N)
    bh = jnp.transpose(bh, (1, 0, 2, 3)).reshape(1, n_blocks * 3 * cb * N)  # f32

    return dict(w1f=w1f, p1=p1, w0c=w0c, p0=p0, whc=whc, bh=bh,
                n_blocks=n_blocks, Cp=Cp)


def chrom_decoder_forward(x, params, *, stream_dtype=jnp.bfloat16):
    """x: (B, latent_dim) f32 -> (out1, out2, out3), each (B, C*N) f32."""
    B, L = x.shape
    C = params["w1"].shape[0]
    N = params["w21"].shape[-1]

    budget, vmem_limit = _vmem_budget_bytes()
    sbytes = jnp.finfo(stream_dtype).bits // 8
    bt = _choose_bt(B)
    n_bt = B // bt
    cb = _choose_cb(C, bt, L, N, sbytes, budget)

    kp = prepare_kernel_params(params, cb, stream_dtype)
    n_blocks, Cp = kp["n_blocks"], kp["Cp"]
    cbn = cb * N

    xs = x.astype(stream_dtype)

    in_specs = [
        pl.BlockSpec((bt, L), lambda c, b: (b, 0)),           # x batch tile
        pl.BlockSpec((L, 16 * cb), lambda c, b: (0, c)),      # folded decode1 slice
        pl.BlockSpec((2, 16 * cb), lambda c, b: (0, c)),      # [bias1; alpha1]
        pl.BlockSpec((16, 32 * cb), lambda c, b: (0, c)),     # compact layer0 weights
        pl.BlockSpec((2, 32 * cb), lambda c, b: (0, c)),      # [bias0; alpha0]
        pl.BlockSpec((96, cbn), lambda c, b: (0, c)),         # compact head weights
        pl.BlockSpec((1, 3 * cbn), lambda c, b: (0, c)),      # fused head bias
    ]
    out_spec = pl.BlockSpec((bt, cbn), lambda c, b: (b, c))   # lane-dense, final layout
    out_shape = jax.ShapeDtypeStruct((B, Cp * N), jnp.float32)

    flops = 2 * B * (L * 16 * Cp
                     + (16 * cb) * (32 * cb) * n_blocks
                     + (32 * cb) * (3 * cbn) * n_blocks)
    bytes_accessed = int(
        (xs.size + kp["w1f"].size + kp["w0c"].size + kp["whc"].size) * sbytes
        + (kp["p1"].size + kp["p0"].size + kp["bh"].size) * 4
        + 3 * B * Cp * N * 4)
    transcendentals = 2 * B * Cp * N

    o1, o2, o3 = pl.pallas_call(
        chrom_decoder_kernel,
        grid=(n_blocks, n_bt),
        in_specs=in_specs,
        out_specs=(out_spec, out_spec, out_spec),
        out_shape=(out_shape, out_shape, out_shape),
        scratch_shapes=[pltpu.VMEM((16 * cb, 32 * cb), stream_dtype),
                        pltpu.VMEM((32 * cb, 3 * cbn), stream_dtype)],
        compiler_params=pltpu.CompilerParams(
            dimension_semantics=("parallel", "arbitrary"),
            vmem_limit_bytes=vmem_limit),
        cost_estimate=pl.CostEstimate(flops=flops,
                                      transcendentals=transcendentals,
                                      bytes_accessed=bytes_accessed),
    )(xs, kp["w1f"], kp["p1"], kp["w0c"], kp["p0"], kp["whc"], kp["bh"])

    if Cp != C:   # drop padded chromosomes (output is already (B, C*N)-ordered)
        o1, o2, o3 = (o[:, :C * N] for o in (o1, o2, o3))
    return o1, o2, o3


# ---------------------------------------------------------------------------
# Parameter init (PyTorch-style) and a pure-JAX reference for verification.
# BN stats get non-trivial "trained" values so the host-side folding is
# exercised; the reference applies BN explicitly (eval mode).
# ---------------------------------------------------------------------------
def init_params(key, num_outputs, latent_dim):
    C = len(num_outputs)
    N = num_outputs[0]
    assert all(n == N for n in num_outputs), "this kernel assumes uniform num_outputs"
    L = latent_dim
    ks = jax.random.split(key, 20)

    def xavier(k, fan_in, fan_out, shape):
        bound = (6.0 / (fan_in + fan_out)) ** 0.5
        return jax.random.uniform(k, shape, jnp.float32, -bound, bound)

    def lin_bias(k, fan_in, shape):
        bound = 1.0 / (fan_in ** 0.5)
        return jax.random.uniform(k, shape, jnp.float32, -bound, bound)

    def bn_stats(kg, kb, km, kv, width):
        g = 1.0 + 0.2 * jax.random.uniform(kg, (C, 1, width), jnp.float32, -1.0, 1.0)
        b = 0.1 * jax.random.normal(kb, (C, 1, width), jnp.float32)
        m = 0.1 * jax.random.normal(km, (C, 1, width), jnp.float32)
        v = 1.0 + 0.2 * jax.random.uniform(kv, (C, 1, width), jnp.float32, 0.0, 1.0)
        return g, b, m, v

    # decode1: Linear(L, C*16), stored transposed & split per chromosome
    w1 = xavier(ks[0], L, C * 16, (L, C * 16))
    w1 = jnp.transpose(w1.reshape(L, C, 16), (1, 0, 2))            # (C, L, 16)
    b1 = lin_bias(ks[1], L, (C * 16,)).reshape(C, 1, 16)

    bn1_g, bn1_b, bn1_m, bn1_v = bn_stats(ks[2], ks[3], ks[4], ks[5], 16)
    bn0_g, bn0_b, bn0_m, bn0_v = bn_stats(ks[6], ks[7], ks[8], ks[9], 32)

    params = dict(
        w1=w1, b1=b1,
        bn1_g=bn1_g, bn1_b=bn1_b, bn1_m=bn1_m, bn1_v=bn1_v,
        alpha1=jnp.float32(0.25),                                  # PyTorch PReLU default
        w0=xavier(ks[10], 16, 32, (C, 16, 32)),
        b0=lin_bias(ks[11], 16, (C, 1, 32)),
        bn0_g=bn0_g, bn0_b=bn0_b, bn0_m=bn0_m, bn0_v=bn0_v,
        alpha0=0.25 + 0.1 * jax.random.uniform(ks[12], (C, 1, 1), jnp.float32, -1.0, 1.0),
        w21=xavier(ks[13], 32, N, (C, 32, N)),
        b21=lin_bias(ks[14], 32, (C, 1, N)),
        w22=xavier(ks[15], 32, N, (C, 32, N)),
        b22=lin_bias(ks[16], 32, (C, 1, N)),
        w23=xavier(ks[17], 32, N, (C, 32, N)),
        b23=lin_bias(ks[18], 32, (C, 1, N)),
    )
    return params


def chrom_decoder_reference(x, params):
    """Pure-JAX mirror of the PyTorch forward (explicit eval-mode BN, per-chrom loop)."""
    C = params["w1"].shape[0]
    outs1, outs2, outs3 = [], [], []
    for c in range(C):
        h = x @ params["w1"][c] + params["b1"][c]
        h = _bn_eval(h, params["bn1_g"][c], params["bn1_b"][c],
                     params["bn1_m"][c], params["bn1_v"][c])
        h = _prelu(h, params["alpha1"])
        h2 = h @ params["w0"][c] + params["b0"][c]
        h2 = _bn_eval(h2, params["bn0_g"][c], params["bn0_b"][c],
                      params["bn0_m"][c], params["bn0_v"][c])
        h2 = _prelu(h2, params["alpha0"][c, 0, 0])
        t1 = h2 @ params["w21"][c] + params["b21"][c]
        t2 = h2 @ params["w22"][c] + params["b22"][c]
        t3 = h2 @ params["w23"][c] + params["b23"][c]
        outs1.append(jnp.exp(t1))
        outs2.append(jnp.maximum(_softplus(t2), SP_EPS))
        outs3.append(t3)
    return (jnp.concatenate(outs1, axis=1),
            jnp.concatenate(outs2, axis=1),
            jnp.concatenate(outs3, axis=1))


if __name__ == "__main__":
    num_outputs = [16] * 12      # 12 "chromosomes", 16 outputs each
    latent_dim = 32
    batch = 8                    # multiple of 8 -> full f32 sublanes, dense stores

    key = jax.random.PRNGKey(0)
    k_x, k_p = jax.random.split(key)
    x = jax.random.normal(k_x, (batch, latent_dim), dtype=jnp.float32)
    params = init_params(k_p, num_outputs, latent_dim)
    total = sum(num_outputs)

    r1, r2, r3 = chrom_decoder_reference(x, params)

    # f32 streaming: tight structural / numerical check (BN folding, compact
    # layouts, in-kernel block-diagonal expansion are all exact in f32).
    fwd_f32 = jax.jit(functools.partial(chrom_decoder_forward,
                                        stream_dtype=jnp.float32))
    o1, o2, o3 = fwd_f32(x, params)
    jax.block_until_ready((o1, o2, o3))
    for got, ref in ((o1, r1), (o2, r2), (o3, r3)):
        assert got.shape == (batch, total)
        assert jnp.allclose(got, ref, rtol=5e-4, atol=1e-5), "f32 mismatch vs reference"

    # bf16 streaming (default production path): same math, inputs/weights are
    # quantized to bfloat16 -> loose sanity tolerance only.
    fwd_bf16 = jax.jit(chrom_decoder_forward)
    q1, q2, q3 = fwd_bf16(x, params)
    jax.block_until_ready((q1, q2, q3))
    for got, ref in ((q1, r1), (q2, r2), (q3, r3)):
        assert got.shape == (batch, total)
        assert jnp.allclose(got, ref, rtol=1e-1, atol=1e-1), "bf16 mismatch vs reference"

    print("KERNEL_OK")
</pallas_src>

<mosaic_0001>
module attributes {stable_mosaic.version = 11 : i64} {
  func.func @chrom_decoder_kernel(%arg0: i32, %arg1: i32, %arg2: memref<8x32xf32, #tpu.memory_space<vmem>>, %arg3: memref<32x128xf32, #tpu.memory_space<vmem>>, %arg4: memref<2x128xf32, #tpu.memory_space<vmem>>, %arg5: memref<16x256xf32, #tpu.memory_space<vmem>>, %arg6: memref<2x256xf32, #tpu.memory_space<vmem>>, %arg7: memref<96x128xf32, #tpu.memory_space<vmem>>, %arg8: memref<1x384xf32, #tpu.memory_space<vmem>>, %arg9: memref<8x128xf32, #tpu.memory_space<vmem>>, %arg10: memref<8x128xf32, #tpu.memory_space<vmem>>, %arg11: memref<8x128xf32, #tpu.memory_space<vmem>>, %arg12: memref<128x256xf32, #tpu.memory_space<vmem>>, %arg13: memref<256x384xf32, #tpu.memory_space<vmem>>) attributes {dimension_semantics = [#tpu.dimension_semantics<parallel>, #tpu.dimension_semantics<arbitrary>], iteration_bounds = array<i64: 2, 1>, scalar_prefetch = 0 : i64, scratch_operands = 2 : i64, tpu.core_type = #tpu.core_type<tc>, window_params = [{transform_indices = @transform_0, window_bounds = array<i64: 8, 32>}, {transform_indices = @transform_1, window_bounds = array<i64: 32, 128>}, {transform_indices = @transform_2, window_bounds = array<i64: 2, 128>}, {transform_indices = @transform_3, window_bounds = array<i64: 16, 256>}, {transform_indices = @transform_4, window_bounds = array<i64: 2, 256>}, {transform_indices = @transform_5, window_bounds = array<i64: 96, 128>}, {transform_indices = @transform_6, window_bounds = array<i64: 1, 384>}, {transform_indices = @transform_7, window_bounds = array<i64: 8, 128>}, {transform_indices = @transform_8, window_bounds = array<i64: 8, 128>}, {transform_indices = @transform_9, window_bounds = array<i64: 8, 128>}]} {
    %cst = arith.constant 0.000000e+00 : f32
    %0 = vector.broadcast %cst : f32 to vector<128x256xf32>
    %c0 = arith.constant 0 : index
    %c0_0 = arith.constant 0 : index
    %1 = vector.load %arg12[%c0, %c0_0] : memref<128x256xf32, #tpu.memory_space<vmem>>, vector<128x256xf32>
    tpu.vector_store %arg12[%c0, %c0_0], %0 {strides = array<i32>} : memref<128x256xf32, #tpu.memory_space<vmem>>, vector<128x256xf32>,
    %cst_1 = arith.constant 0.000000e+00 : f32
    %2 = vector.broadcast %cst_1 : f32 to vector<256x384xf32>
    %c0_2 = arith.constant 0 : index
    %c0_3 = arith.constant 0 : index
    %3 = vector.load %arg13[%c0_2, %c0_3] : memref<256x384xf32, #tpu.memory_space<vmem>>, vector<256x384xf32>
    tpu.vector_store %arg13[%c0_2, %c0_3], %2 {strides = array<i32>} : memref<256x384xf32, #tpu.memory_space<vmem>>, vector<256x384xf32>,
    %c0_4 = arith.constant 0 : index
    %c0_5 = arith.constant 0 : index
    %4 = vector.load %arg5[%c0_4, %c0_5] : memref<16x256xf32, #tpu.memory_space<vmem>>, vector<16x32xf32>
    %c0_6 = arith.constant 0 : index
    %c0_7 = arith.constant 0 : index
    %5 = vector.load %arg12[%c0_6, %c0_7] : memref<128x256xf32, #tpu.memory_space<vmem>>, vector<16x32xf32>
    tpu.vector_store %arg12[%c0_6, %c0_7], %4 {strides = array<i32>} : memref<128x256xf32, #tpu.memory_space<vmem>>, vector<16x32xf32>,
    %c0_8 = arith.constant 0 : index
    %c0_9 = arith.constant 0 : index
    %6 = vector.load %arg7[%c0_8, %c0_9] : memref<96x128xf32, #tpu.memory_space<vmem>>, vector<32x16xf32>
    %c0_10 = arith.constant 0 : index
    %c0_11 = arith.constant 0 : index
    %7 = vector.load %arg13[%c0_10, %c0_11] : memref<256x384xf32, #tpu.memory_space<vmem>>, vector<32x16xf32>
    tpu.vector_store %arg13[%c0_10, %c0_11], %6 {strides = array<i32>} : memref<256x384xf32, #tpu.memory_space<vmem>>, vector<32x16xf32>,
    %c32 = arith.constant 32 : index
    %c0_12 = arith.constant 0 : index
    %8 = vector.load %arg7[%c32, %c0_12] : memref<96x128xf32, #tpu.memory_space<vmem>>, vector<32x16xf32>
    %c0_13 = arith.constant 0 : index
    %c128 = arith.constant 128 : index
    %9 = vector.load %arg13[%c0_13, %c128] : memref<256x384xf32, #tpu.memory_space<vmem>>, vector<32x16xf32>
    tpu.vector_store %arg13[%c0_13, %c128], %8 {strides = array<i32>} : memref<256x384xf32, #tpu.memory_space<vmem>>, vector<32x16xf32>,
    %c64 = arith.constant 64 : index
    %c0_14 = arith.constant 0 : index
    %10 = vector.load %arg7[%c64, %c0_14] : memref<96x128xf32, #tpu.memory_space<vmem>>, vector<32x16xf32>
    %c0_15 = arith.constant 0 : index
    %c256 = arith.constant 256 : index
    %11 = vector.load %arg13[%c0_15, %c256] : memref<256x384xf32, #tpu.memory_space<vmem>>, vector<32x16xf32>
    tpu.vector_store %arg13[%c0_15, %c256], %10 {strides = array<i32>} : memref<256x384xf32, #tpu.memory_space<vmem>>, vector<32x16xf32>,
    %c0_16 = arith.constant 0 : index
    %c32_17 = arith.constant 32 : index
    %12 = vector.load %arg5[%c0_16, %c32_17] : memref<16x256xf32, #tpu.memory_space<vmem>>, vector<16x32xf32>
    %c16 = arith.constant 16 : index
    %c32_18 = arith.constant 32 : index
    %13 = vector.load %arg12[%c16, %c32_18] : memref<128x256xf32, #tpu.memory_space<vmem>>, vector<16x32xf32>
    tpu.vector_store %arg12[%c16, %c32_18], %12 {strides = array<i32>} : memref<128x256xf32, #tpu.memory_space<vmem>>, vector<16x32xf32>,
    %c0_19 = arith.constant 0 : index
    %c16_20 = arith.constant 16 : index
    %14 = vector.load %arg7[%c0_19, %c16_20] : memref<96x128xf32, #tpu.memory_space<vmem>>, vector<32x16xf32>
    %c32_21 = arith.constant 32 : index
    %c16_22 = arith.constant 16 : index
    %15 = vector.load %arg13[%c32_21, %c16_22] : memref<256x384xf32, #tpu.memory_space<vmem>>, vector<32x16xf32>
    tpu.vector_store %arg13[%c32_21, %c16_22], %14 {strides = array<i32>} : memref<256x384xf32, #tpu.memory_space<vmem>>, vector<32x16xf32>,
    %c32_23 = arith.constant 32 : index
    %c16_24 = arith.constant 16 : index
    %16 = vector.load %arg7[%c32_23, %c16_24] : memref<96x128xf32, #tpu.memory_space<vmem>>, vector<32x16xf32>
    %c32_25 = arith.constant 32 : index
    %c144 = arith.constant 144 : index
    %17 = vector.load %arg13[%c32_25, %c144] : memref<256x384xf32, #tpu.memory_space<vmem>>, vector<32x16xf32>
    tpu.vector_store %arg13[%c32_25, %c144], %16 {strides = array<i32>} : memref<256x384xf32, #tpu.memory_space<vmem>>, vector<32x16xf32>,
    %c64_26 = arith.constant 64 : index
    %c16_27 = arith.constant 16 : index
    %18 = vector.load %arg7[%c64_26, %c16_27] : memref<96x128xf32, #tpu.memory_space<vmem>>, vector<32x16xf32>
    %c32_28 = arith.constant 32 : index
    %c272 = arith.constant 272 : index
    %19 = vector.load %arg13[%c32_28, %c272] : memref<256x384xf32, #tpu.memory_space<vmem>>, vector<32x16xf32>
    tpu.vector_store %arg13[%c32_28, %c272], %18 {strides = array<i32>} : memref<256x384xf32, #tpu.memory_space<vmem>>, vector<32x16xf32>,
    %c0_29 = arith.constant 0 : index
    %c64_30 = arith.constant 64 : index
    %20 = vector.load %arg5[%c0_29, %c64_30] : memref<16x256xf32, #tpu.memory_space<vmem>>, vector<16x32xf32>
    %c32_31 = arith.constant 32 : index
    %c64_32 = arith.constant 64 : index
    %21 = vector.load %arg12[%c32_31, %c64_32] : memref<128x256xf32, #tpu.memory_space<vmem>>, vector<16x32xf32>
    tpu.vector_store %arg12[%c32_31, %c64_32], %20 {strides = array<i32>} : memref<128x256xf32, #tpu.memory_space<vmem>>, vector<16x32xf32>,
    %c0_33 = arith.constant 0 : index
    %c32_34 = arith.constant 32 : index
    %22 = vector.load %arg7[%c0_33, %c32_34] : memref<96x128xf32, #tpu.memory_space<vmem>>, vector<32x16xf32>
    %c64_35 = arith.constant 64 : index
    %c32_36 = arith.constant 32 : index
    %23 = vector.load %arg13[%c64_35, %c32_36] : memref<256x384xf32, #tpu.memory_space<vmem>>, vector<32x16xf32>
    tpu.vector_store %arg13[%c64_35, %c32_36], %22 {strides = array<i32>} : memref<256x384xf32, #tpu.memory_space<vmem>>, vector<32x16xf32>,
    %c32_37 = arith.constant 32 : index
    %c32_38 = arith.constant 32 : index
    %24 = vector.load %arg7[%c32_37, %c32_38] : memref<96x128xf32, #tpu.memory_space<vmem>>, vector<32x16xf32>
    %c64_39 = arith.constant 64 : index
    %c160 = arith.constant 160 : index
    %25 = vector.load %arg13[%c64_39, %c160] : memref<256x384xf32, #tpu.memory_space<vmem>>, vector<32x16xf32>
    tpu.vector_store %arg13[%c64_39, %c160], %24 {strides = array<i32>} : memref<256x384xf32, #tpu.memory_space<vmem>>, vector<32x16xf32>,
    %c64_40 = arith.constant 64 : index
    %c32_41 = arith.constant 32 : index
    %26 = vector.load %arg7[%c64_40, %c32_41] : memref<96x128xf32, #tpu.memory_space<vmem>>, vector<32x16xf32>
    %c64_42 = arith.constant 64 : index
    %c288 = arith.constant 288 : index
    %27 = vector.load %arg13[%c64_42, %c288] : memref<256x384xf32, #tpu.memory_space<vmem>>, vector<32x16xf32>
    tpu.vector_store %arg13[%c64_42, %c288], %26 {strides = array<i32>} : memref<256x384xf32, #tpu.memory_space<vmem>>, vector<32x16xf32>,
    %c0_43 = arith.constant 0 : index
    %c96 = arith.constant 96 : index
    %28 = vector.load %arg5[%c0_43, %c96] : memref<16x256xf32, #tpu.memory_space<vmem>>, vector<16x32xf32>
    %c48 = arith.constant 48 : index
    %c96_44 = arith.constant 96 : index
    %29 = vector.load %arg12[%c48, %c96_44] : memref<128x256xf32, #tpu.memory_space<vmem>>, vector<16x32xf32>
    tpu.vector_store %arg12[%c48, %c96_44], %28 {strides = array<i32>} : memref<128x256xf32, #tpu.memory_space<vmem>>, vector<16x32xf32>,
    %c0_45 = arith.constant 0 : index
    %c48_46 = arith.constant 48 : index
    %30 = vector.load %arg7[%c0_45, %c48_46] : memref<96x128xf32, #tpu.memory_space<vmem>>, vector<32x16xf32>
    %c96_47 = arith.constant 96 : index
    %c48_48 = arith.constant 48 : index
    %31 = vector.load %arg13[%c96_47, %c48_48] : memref<256x384xf32, #tpu.memory_space<vmem>>, vector<32x16xf32>
    tpu.vector_store %arg13[%c96_47, %c48_48], %30 {strides = array<i32>} : memref<256x384xf32, #tpu.memory_space<vmem>>, vector<32x16xf32>,
    %c32_49 = arith.constant 32 : index
    %c48_50 = arith.constant 48 : index
    %32 = vector.load %arg7[%c32_49, %c48_50] : memref<96x128xf32, #tpu.memory_space<vmem>>, vector<32x16xf32>
    %c96_51 = arith.constant 96 : index
    %c176 = arith.constant 176 : index
    %33 = vector.load %arg13[%c96_51, %c176] : memref<256x384xf32, #tpu.memory_space<vmem>>, vector<32x16xf32>
    tpu.vector_store %arg13[%c96_51, %c176], %32 {strides = array<i32>} : memref<256x384xf32, #tpu.memory_space<vmem>>, vector<32x16xf32>,
    %c64_52 = arith.constant 64 : index
    %c48_53 = arith.constant 48 : index
    %34 = vector.load %arg7[%c64_52, %c48_53] : memref<96x128xf32, #tpu.memory_space<vmem>>, vector<32x16xf32>
    %c96_54 = arith.constant 96 : index
    %c304 = arith.constant 304 : index
    %35 = vector.load %arg13[%c96_54, %c304] : memref<256x384xf32, #tpu.memory_space<vmem>>, vector<32x16xf32>
    tpu.vector_store %arg13[%c96_54, %c304], %34 {strides = array<i32>} : memref<256x384xf32, #tpu.memory_space<vmem>>, vector<32x16xf32>,
    %c0_55 = arith.constant 0 : index
    %c128_56 = arith.constant 128 : index
    %36 = vector.load %arg5[%c0_55, %c128_56] : memref<16x256xf32, #tpu.memory_space<vmem>>, vector<16x32xf32>
    %c64_57 = arith.constant 64 : index
    %c128_58 = arith.constant 128 : index
    %37 = vector.load %arg12[%c64_57, %c128_58] : memref<128x256xf32, #tpu.memory_space<vmem>>, vector<16x32xf32>
    tpu.vector_store %arg12[%c64_57, %c128_58], %36 {strides = array<i32>} : memref<128x256xf32, #tpu.memory_space<vmem>>, vector<16x32xf32>,
    %c0_59 = arith.constant 0 : index
    %c64_60 = arith.constant 64 : index
    %38 = vector.load %arg7[%c0_59, %c64_60] : memref<96x128xf32, #tpu.memory_space<vmem>>, vector<32x16xf32>
    %c128_61 = arith.constant 128 : index
    %c64_62 = arith.constant 64 : index
    %39 = vector.load %arg13[%c128_61, %c64_62] : memref<256x384xf32, #tpu.memory_space<vmem>>, vector<32x16xf32>
    tpu.vector_store %arg13[%c128_61, %c64_62], %38 {strides = array<i32>} : memref<256x384xf32, #tpu.memory_space<vmem>>, vector<32x16xf32>,
    %c32_63 = arith.constant 32 : index
    %c64_64 = arith.constant 64 : index
    %40 = vector.load %arg7[%c32_63, %c64_64] : memref<96x128xf32, #tpu.memory_space<vmem>>, vector<32x16xf32>
    %c128_65 = arith.constant 128 : index
    %c192 = arith.constant 192 : index
    %41 = vector.load %arg13[%c128_65, %c192] : memref<256x384xf32, #tpu.memory_space<vmem>>, vector<32x16xf32>
    tpu.vector_store %arg13[%c128_65, %c192], %40 {strides = array<i32>} : memref<256x384xf32, #tpu.memory_space<vmem>>, vector<32x16xf32>,
    %c64_66 = arith.constant 64 : index
    %c64_67 = arith.constant 64 : index
    %42 = vector.load %arg7[%c64_66, %c64_67] : memref<96x128xf32, #tpu.memory_space<vmem>>, vector<32x16xf32>
    %c128_68 = arith.constant 128 : index
    %c320 = arith.constant 320 : index
    %43 = vector.load %arg13[%c128_68, %c320] : memref<256x384xf32, #tpu.memory_space<vmem>>, vector<32x16xf32>
    tpu.vector_store %arg13[%c128_68, %c320], %42 {strides = array<i32>} : memref<256x384xf32, #tpu.memory_space<vmem>>, vector<32x16xf32>,
    %c0_69 = arith.constant 0 : index
    %c160_70 = arith.constant 160 : index
    %44 = vector.load %arg5[%c0_69, %c160_70] : memref<16x256xf32, #tpu.memory_space<vmem>>, vector<16x32xf32>
    %c80 = arith.constant 80 : index
    %c160_71 = arith.constant 160 : index
    %45 = vector.load %arg12[%c80, %c160_71] : memref<128x256xf32, #tpu.memory_space<vmem>>, vector<16x32xf32>
    tpu.vector_store %arg12[%c80, %c160_71], %44 {strides = array<i32>} : memref<128x256xf32, #tpu.memory_space<vmem>>, vector<16x32xf32>,
    %c0_72 = arith.constant 0 : index
    %c80_73 = arith.constant 80 : index
    %46 = vector.load %arg7[%c0_72, %c80_73] : memref<96x128xf32, #tpu.memory_space<vmem>>, vector<32x16xf32>
    %c160_74 = arith.constant 160 : index
    %c80_75 = arith.constant 80 : index
    %47 = vector.load %arg13[%c160_74, %c80_75] : memref<256x384xf32, #tpu.memory_space<vmem>>, vector<32x16xf32>
    tpu.vector_store %arg13[%c160_74, %c80_75], %46 {strides = array<i32>} : memref<256x384xf32, #tpu.memory_space<vmem>>, vector<32x16xf32>,
    %c32_76 = arith.constant 32 : index
    %c80_77 = arith.constant 80 : index
    %48 = vector.load %arg7[%c32_76, %c80_77] : memref<96x128xf32, #tpu.memory_space<vmem>>, vector<32x16xf32>
    %c160_78 = arith.constant 160 : index
    %c208 = arith.constant 208 : index
    %49 = vector.load %arg13[%c160_78, %c208] : memref<256x384xf32, #tpu.memory_space<vmem>>, vector<32x16xf32>
    tpu.vector_store %arg13[%c160_78, %c208], %48 {strides = array<i32>} : memref<256x384xf32, #tpu.memory_space<vmem>>, vector<32x16xf32>,
    %c64_79 = arith.constant 64 : index
    %c80_80 = arith.constant 80 : index
    %50 = vector.load %arg7[%c64_79, %c80_80] : memref<96x128xf32, #tpu.memory_space<vmem>>, vector<32x16xf32>
    %c160_81 = arith.constant 160 : index
    %c336 = arith.constant 336 : index
    %51 = vector.load %arg13[%c160_81, %c336] : memref<256x384xf32, #tpu.memory_space<vmem>>, vector<32x16xf32>
    tpu.vector_store %arg13[%c160_81, %c336], %50 {strides = array<i32>} : memref<256x384xf32, #tpu.memory_space<vmem>>, vector<32x16xf32>,
    %c0_82 = arith.constant 0 : index
    %c192_83 = arith.constant 192 : index
    %52 = vector.load %arg5[%c0_82, %c192_83] : memref<16x256xf32, #tpu.memory_space<vmem>>, vector<16x32xf32>
    %c96_84 = arith.constant 96 : index
    %c192_85 = arith.constant 192 : index
    %53 = vector.load %arg12[%c96_84, %c192_85] : memref<128x256xf32, #tpu.memory_space<vmem>>, vector<16x32xf32>
    tpu.vector_store %arg12[%c96_84, %c192_85], %52 {strides = array<i32>} : memref<128x256xf32, #tpu.memory_space<vmem>>, vector<16x32xf32>,
    %c0_86 = arith.constant 0 : index
    %c96_87 = arith.constant 96 : index
    %54 = vector.load %arg7[%c0_86, %c96_87] : memref<96x128xf32, #tpu.memory_space<vmem>>, vector<32x16xf32>
    %c192_88 = arith.constant 192 : index
    %c96_89 = arith.constant 96 : index
    %55 = vector.load %arg13[%c192_88, %c96_89] : memref<256x384xf32, #tpu.memory_space<vmem>>, vector<32x16xf32>
    tpu.vector_store %arg13[%c192_88, %c96_89], %54 {strides = array<i32>} : memref<256x384xf32, #tpu.memory_space<vmem>>, vector<32x16xf32>,
    %c32_90 = arith.constant 32 : index
    %c96_91 = arith.constant 96 : index
    %56 = vector.load %arg7[%c32_90, %c96_91] : memref<96x128xf32, #tpu.memory_space<vmem>>, vector<32x16xf32>
    %c192_92 = arith.constant 192 : index
    %c224 = arith.constant 224 : index
    %57 = vector.load %arg13[%c192_92, %c224] : memref<256x384xf32, #tpu.memory_space<vmem>>, vector<32x16xf32>
    tpu.vector_store %arg13[%c192_92, %c224], %56 {strides = array<i32>} : memref<256x384xf32, #tpu.memory_space<vmem>>, vector<32x16xf32>,
    %c64_93 = arith.constant 64 : index
    %c96_94 = arith.constant 96 : index
    %58 = vector.load %arg7[%c64_93, %c96_94] : memref<96x128xf32, #tpu.memory_space<vmem>>, vector<32x16xf32>
    %c192_95 = arith.constant 192 : index
    %c352 = arith.constant 352 : index
    %59 = vector.load %arg13[%c192_95, %c352] : memref<256x384xf32, #tpu.memory_space<vmem>>, vector<32x16xf32>
    tpu.vector_store %arg13[%c192_95, %c352], %58 {strides = array<i32>} : memref<256x384xf32, #tpu.memory_space<vmem>>, vector<32x16xf32>,
    %c0_96 = arith.constant 0 : index
    %c224_97 = arith.constant 224 : index
    %60 = vector.load %arg5[%c0_96, %c224_97] : memref<16x256xf32, #tpu.memory_space<vmem>>, vector<16x32xf32>
    %c112 = arith.constant 112 : index
    %c224_98 = arith.constant 224 : index
    %61 = vector.load %arg12[%c112, %c224_98] : memref<128x256xf32, #tpu.memory_space<vmem>>, vector<16x32xf32>
    tpu.vector_store %arg12[%c112, %c224_98], %60 {strides = array<i32>} : memref<128x256xf32, #tpu.memory_space<vmem>>, vector<16x32xf32>,
    %c0_99 = arith.constant 0 : index
    %c112_100 = arith.constant 112 : index
    %62 = vector.load %arg7[%c0_99, %c112_100] : memref<96x128xf32, #tpu.memory_space<vmem>>, vector<32x16xf32>
    %c224_101 = arith.constant 224 : index
    %c112_102 = arith.constant 112 : index
    %63 = vector.load %arg13[%c224_101, %c112_102] : memref<256x384xf32, #tpu.memory_space<vmem>>, vector<32x16xf32>
    tpu.vector_store %arg13[%c224_101, %c112_102], %62 {strides = array<i32>} : memref<256x384xf32, #tpu.memory_space<vmem>>, vector<32x16xf32>,
    %c32_103 = arith.constant 32 : index
    %c112_104 = arith.constant 112 : index
    %64 = vector.load %arg7[%c32_103, %c112_104] : memref<96x128xf32, #tpu.memory_space<vmem>>, vector<32x16xf32>
    %c224_105 = arith.constant 224 : index
    %c240 = arith.constant 240 : index
    %65 = vector.load %arg13[%c224_105, %c240] : memref<256x384xf32, #tpu.memory_space<vmem>>, vector<32x16xf32>
    tpu.vector_store %arg13[%c224_105, %c240], %64 {strides = array<i32>} : memref<256x384xf32, #tpu.memory_space<vmem>>, vector<32x16xf32>,
    %c64_106 = arith.constant 64 : index
    %c112_107 = arith.constant 112 : index
    %66 = vector.load %arg7[%c64_106, %c112_107] : memref<96x128xf32, #tpu.memory_space<vmem>>, vector<32x16xf32>
    %c224_108 = arith.constant 224 : index
    %c368 = arith.constant 368 : index
    %67 = vector.load %arg13[%c224_108, %c368] : memref<256x384xf32, #tpu.memory_space<vmem>>, vector<32x16xf32>
    tpu.vector_store %arg13[%c224_108, %c368], %66 {strides = array<i32>} : memref<256x384xf32, #tpu.memory_space<vmem>>, vector<32x16xf32>,
    %c0_109 = arith.constant 0 : index
    %c0_110 = arith.constant 0 : index
    %68 = vector.load %arg2[%c0_109, %c0_110] : memref<8x32xf32, #tpu.memory_space<vmem>>, vector<8x32xf32>
    %c0_111 = arith.constant 0 : index
    %c0_112 = arith.constant 0 : index
    %69 = vector.load %arg3[%c0_111, %c0_112] : memref<32x128xf32, #tpu.memory_space<vmem>>, vector<32x128xf32>
    %cst_113 = arith.constant dense<0.000000e+00> : vector<8x128xf32>
    %70 = tpu.matmul %68, %69, %cst_113 {dimension_numbers = #tpu.dot_dimension_numbers<[1], [0], [0], [1], [0, 0, 1, 1], [], []>} : vector<8x32xf32>, vector<32x128xf32>, vector<8x128xf32> -> vector<8x128xf32>
    %c0_114 = arith.constant 0 : index
    %c0_115 = arith.constant 0 : index
    %71 = vector.load %arg4[%c0_114, %c0_115] : memref<2x128xf32, #tpu.memory_space<vmem>>, vector<1x128xf32>
    %72 = vector.shape_cast %71 : vector<1x128xf32> to vector<128xf32>
    %73 = vector.shape_cast %72 : vector<128xf32> to vector<1x128xf32>
    %74 = vector.broadcast %73 : vector<1x128xf32> to vector<8x128xf32>
    %75 = arith.addf %70, %74 : vector<8x128xf32>
    %c1 = arith.constant 1 : index
    %c0_116 = arith.constant 0 : index
    %76 = vector.load %arg4[%c1, %c0_116] : memref<2x128xf32, #tpu.memory_space<vmem>>, vector<1x128xf32>
    %77 = vector.shape_cast %76 : vector<1x128xf32> to vector<128xf32>
    %cst_117 = arith.constant 0.000000e+00 : f32
    %78 = vector.broadcast %cst_117 : f32 to vector<8x128xf32>
    %79 = arith.cmpf oge, %75, %78 : vector<8x128xf32>
    %80 = vector.shape_cast %77 : vector<128xf32> to vector<1x128xf32>
    %81 = vector.broadcast %80 : vector<1x128xf32> to vector<8x128xf32>
    %82 = arith.mulf %81, %75 : vector<8x128xf32>
    %83 = arith.select %79, %75, %82 : vector<8x128xi1>, vector<8x128xf32>
    %c0_118 = arith.constant 0 : index
    %c0_119 = arith.constant 0 : index
    %84 = vector.load %arg12[%c0_118, %c0_119] : memref<128x256xf32, #tpu.memory_space<vmem>>, vector<128x256xf32>
    %cst_120 = arith.constant dense<0.000000e+00> : vector<8x256xf32>
    %85 = tpu.matmul %83, %84, %cst_120 {dimension_numbers = #tpu.dot_dimension_numbers<[1], [0], [0], [1], [0, 0, 1, 1], [], []>} : vector<8x128xf32>, vector<128x256xf32>, vector<8x256xf32> -> vector<8x256xf32>
    %c0_121 = arith.constant 0 : index
    %c0_122 = arith.constant 0 : index
    %86 = vector.load %arg6[%c0_121, %c0_122] : memref<2x256xf32, #tpu.memory_space<vmem>>, vector<1x256xf32>
    %87 = vector.shape_cast %86 : vector<1x256xf32> to vector<256xf32>
    %88 = vector.shape_cast %87 : vector<256xf32> to vector<1x256xf32>
    %89 = vector.broadcast %88 : vector<1x256xf32> to vector<8x256xf32>
    %90 = arith.addf %85, %89 : vector<8x256xf32>
    %c1_123 = arith.constant 1 : index
    %c0_124 = arith.constant 0 : index
    %91 = vector.load %arg6[%c1_123, %c0_124] : memref<2x256xf32, #tpu.memory_space<vmem>>, vector<1x256xf32>
    %92 = vector.shape_cast %91 : vector<1x256xf32> to vector<256xf32>
    %cst_125 = arith.constant 0.000000e+00 : f32
    %93 = vector.broadcast %cst_125 : f32 to vector<8x256xf32>
    %94 = arith.cmpf oge, %90, %93 : vector<8x256xf32>
    %95 = vector.shape_cast %92 : vector<256xf32> to vector<1x256xf32>
    %96 = vector.broadcast %95 : vector<1x256xf32> to vector<8x256xf32>
    %97 = arith.mulf %96, %90 : vector<8x256xf32>
    %98 = arith.select %94, %90, %97 : vector<8x256xi1>, vector<8x256xf32>
    %c0_126 = arith.constant 0 : index
    %c0_127 = arith.constant 0 : index
    %99 = vector.load %arg13[%c0_126, %c0_127] : memref<256x384xf32, #tpu.memory_space<vmem>>, vector<256x384xf32>
    %cst_128 = arith.constant dense<0.000000e+00> : vector<8x384xf32>
    %100 = tpu.matmul %98, %99, %cst_128 {dimension_numbers = #tpu.dot_dimension_numbers<[1], [0], [0], [1], [0, 0, 1, 1], [], []>} : vector<8x256xf32>, vector<256x384xf32>, vector<8x384xf32> -> vector<8x384xf32>
    %c0_129 = arith.constant 0 : index
    %c0_130 = arith.constant 0 : index
    %101 = vector.load %arg8[%c0_129, %c0_130] : memref<1x384xf32, #tpu.memory_space<vmem>>, vector<1x384xf32>
    %102 = vector.shape_cast %101 : vector<1x384xf32> to vector<384xf32>
    %103 = vector.shape_cast %102 : vector<384xf32> to vector<1x384xf32>
    %104 = vector.broadcast %103 : vector<1x384xf32> to vector<8x384xf32>
    %105 = arith.addf %100, %104 : vector<8x384xf32>
    %106 = vector.extract_strided_slice %105 {offsets = [0, 0], sizes = [8, 128], strides = [1, 1]} : vector<8x384xf32> to vector<8x128xf32>
    %107 = math.exp %106 : vector<8x128xf32>
    %c0_131 = arith.constant 0 : index
    %c0_132 = arith.constant 0 : index
    %108 = vector.load %arg9[%c0_131, %c0_132] : memref<8x128xf32, #tpu.memory_space<vmem>>, vector<8x128xf32>
    tpu.vector_store %arg9[%c0_131, %c0_132], %107 {strides = array<i32>} : memref<8x128xf32, #tpu.memory_space<vmem>>, vector<8x128xf32>,
    %109 = vector.extract_strided_slice %105 {offsets = [0, 128], sizes = [8, 128], strides = [1, 1]} : vector<8x384xf32> to vector<8x128xf32>
    %cst_133 = arith.constant 2.000000e+01 : f32
    %110 = vector.broadcast %cst_133 : f32 to vector<8x128xf32>
    %111 = arith.cmpf ogt, %109, %110 : vector<8x128xf32>
    %cst_134 = arith.constant 2.000000e+01 : f32
    %112 = vector.broadcast %cst_134 : f32 to vector<8x128xf32>
    %113 = arith.minimumf %109, %112 : vector<8x128xf32>
    %114 = math.exp %113 : vector<8x128xf32>
    %115 = math.log1p %114 : vector<8x128xf32>
    %116 = arith.select %111, %109, %115 : vector<8x128xi1>, vector<8x128xf32>
    %cst_135 = arith.constant 9.99999974E-5 : f32
    %117 = vector.broadcast %cst_135 : f32 to vector<8x128xf32>
    %118 = arith.maximumf %116, %117 : vector<8x128xf32>
    %c0_136 = arith.constant 0 : index
    %c0_137 = arith.constant 0 : index
    %119 = vector.load %arg10[%c0_136, %c0_137] : memref<8x128xf32, #tpu.memory_space<vmem>>, vector<8x128xf32>
    tpu.vector_store %arg10[%c0_136, %c0_137], %118 {strides = array<i32>} : memref<8x128xf32, #tpu.memory_space<vmem>>, vector<8x128xf32>,
    %120 = vector.extract_strided_slice %105 {offsets = [0, 256], sizes = [8, 128], strides = [1, 1]} : vector<8x384xf32> to vector<8x128xf32>
    %c0_138 = arith.constant 0 : index
    %c0_139 = arith.constant 0 : index
    %121 = vector.load %arg11[%c0_138, %c0_139] : memref<8x128xf32, #tpu.memory_space<vmem>>, vector<8x128xf32>
    tpu.vector_store %arg11[%c0_138, %c0_139], %120 {strides = array<i32>} : memref<8x128xf32, #tpu.memory_space<vmem>>, vector<8x128xf32>,
    return
  }
  func.func @transform_0(%arg0: i32, %arg1: i32) -> (i32, i32) {
    %c0_i32 = arith.constant 0 : i32
    %c0_i32_0 = arith.constant 0 : i32
    return %arg1, %c0_i32 : i32, i32
  }
  func.func @transform_1(%arg0: i32, %arg1: i32) -> (i32, i32) {
    %c0_i32 = arith.constant 0 : i32
    %c0_i32_0 = arith.constant 0 : i32
    return %c0_i32, %arg0 : i32, i32
  }
  func.func @transform_2(%arg0: i32, %arg1: i32) -> (i32, i32) {
    %c0_i32 = arith.constant 0 : i32
    %c0_i32_0 = arith.constant 0 : i32
    return %c0_i32, %arg0 : i32, i32
  }
  func.func @transform_3(%arg0: i32, %arg1: i32) -> (i32, i32) {
    %c0_i32 = arith.constant 0 : i32
    %c0_i32_0 = arith.constant 0 : i32
    return %c0_i32, %arg0 : i32, i32
  }
  func.func @transform_4(%arg0: i32, %arg1: i32) -> (i32, i32) {
    %c0_i32 = arith.constant 0 : i32
    %c0_i32_0 = arith.constant 0 : i32
    return %c0_i32, %arg0 : i32, i32
  }
  func.func @transform_5(%arg0: i32, %arg1: i32) -> (i32, i32) {
    %c0_i32 = arith.constant 0 : i32
    %c0_i32_0 = arith.constant 0 : i32
    return %c0_i32, %arg0 : i32, i32
  }
  func.func @transform_6(%arg0: i32, %arg1: i32) -> (i32, i32) {
    %c0_i32 = arith.constant 0 : i32
    %c0_i32_0 = arith.constant 0 : i32
    return %c0_i32, %arg0 : i32, i32
  }
  func.func @transform_7(%arg0: i32, %arg1: i32) -> (i32, i32) {
    %c0_i32 = arith.constant 0 : i32
    return %arg1, %arg0 : i32, i32
  }
  func.func @transform_8(%arg0: i32, %arg1: i32) -> (i32, i32) {
    %c0_i32 = arith.constant 0 : i32
    return %arg1, %arg0 : i32, i32
  }
  func.func @transform_9(%arg0: i32, %arg1: i32) -> (i32, i32) {
    %c0_i32 = arith.constant 0 : i32
    return %arg1, %arg0 : i32, i32
  }
}

</mosaic_0001>

<llo_original>
// kernel: chrom_decoder_forward.1
$region0: #{chrom_decoder_forward.1}
  #allocation0 [shape = 'u32[]', space=smem, size = 0x4, offset = 0x4, fixed_abs, tag = 'smem constant byte address 0x4 - core index']
  #allocation1 [shape = 'u32[72,128]{1,0:T(1,128)}', space=vmem, size = 0x9000, scoped, tag = 'internal scratch']
  #allocation2 [shape = 'f32[128,256]{1,0:T(8,128)}', space=vmem, size = 0x20000, scoped, tag = 'scratch operand']
  #allocation3 [shape = 'f32[256,384]{1,0:T(8,128)}', space=vmem, size = 0x60000, scoped, tag = 'scratch operand']
  %s0 = inlined_call_operand.vmem [shape: f32[8,32], index: 0, kind: input, shape index: {}]
  %s1 = inlined_call_operand.vmem [shape: f32[32,256], index: 1, kind: input, shape index: {}]
  %s2 = inlined_call_operand.vmem [shape: f32[2,256], index: 2, kind: input, shape index: {}]
  %s3 = inlined_call_operand.vmem [shape: f32[16,512], index: 3, kind: input, shape index: {}]
  %s4 = inlined_call_operand.vmem [shape: f32[2,512], index: 4, kind: input, shape index: {}]
  %s5 = inlined_call_operand.vmem [shape: f32[96,256], index: 5, kind: input, shape index: {}]
  %s6 = inlined_call_operand.vmem [shape: f32[1,768], index: 6, kind: input, shape index: {}]
  %s7 = inlined_call_operand.hbm [shape: f32[8,256], index: 7, kind: output, shape index: {0}]
  %s8 = inlined_call_operand.hbm [shape: f32[8,256], index: 8, kind: output, shape index: {1}]
  %s9 = inlined_call_operand.hbm [shape: f32[8,256], index: 9, kind: output, shape index: {2}]
  %10 = xla_tuple %s7, %s8, %s9
  %s11 = sld [smem:[#allocation0]]
  $region176: #{chrom_decoder_forward.1} parent=0
    _
  %s13 = ssub.s32 1, %s11
  %s14 = scalar_select 0, %s13, %s11
  $region1: #{chrom_decoder_forward.1} parent=0
    #allocation4 [shape = 'u8[32768]{0}', space=vmem, size = 0x8000, scoped, tag = 'input window, operand 1']
    #allocation5 [shape = 'u8[32768]{0}', space=vmem, size = 0x8000, scoped, tag = 'input window, operand 3']
    #allocation6 [shape = 'u8[98304]{0}', space=vmem, size = 0x18000, scoped, tag = 'input window, operand 5']
    #allocation7 [shape = 'u8[8192]{0}', space=vmem, size = 0x2000, scoped, tag = 'output window, operand 0']
    #allocation8 [shape = 's32[2]{0}', space=sflag, size = 0x8, scoped, tag = 'scoped memory for chrom_decoder_forward.1']
    #allocation9 [shape = 'u8[8192]{0}', space=vmem, size = 0x2000, scoped, tag = 'output window, operand 1']
    #allocation10 [shape = 's32[2]{0}', space=sflag, size = 0x8, scoped, tag = 'scoped memory for chrom_decoder_forward.1']
    #allocation11 [shape = 'u8[8192]{0}', space=vmem, size = 0x2000, scoped, tag = 'output window, operand 2']
    %15 = vsyncpa [#allocation8], 0
    %s16 = scalar_lea.sflag [#allocation8], 1
    %17 = vsyncpa %s16, 0
    %18 = vsyncpa [#allocation10], 0
    %s19 = scalar_lea.sflag [#allocation10], 1
    %20 = vsyncpa %s19, 0
    loop: start=0, step=1, limit=4
    $region2: #{chrom_decoder_forward.1} parent=1 // loop_pre_header
      _
    $region3: #{chrom_decoder_forward.1} parent=1 // loop_header
      %s22 = sphi 0, %s26
      %p23 = scmp.ge.s32.totalorder %s22, 4
      %s29 = sphi 0, %s41
      %s30 = sphi 0, %s37
      %s31 = sphi 0, %s29
      %s32 = sphi 0, %s30
      %s33 = sphi 0, %s31
      %s34 = sphi 0, %s32
      %s44 = sphi 0, %s46
      %s47 = sphi 0, %s44
      %s48 = sphi 0, %s47
      %s64 = sphi 0, %s48
      %s70 = sphi 0, %s72
      %s73 = sphi 0, %s70
      %s74 = sphi 0, %s73
      %s90 = sphi 0, %s74
      %s96 = sphi 0, %s98
      %s99 = sphi 0, %s96
      %s100 = sphi 0, %s99
      %s116 = sphi 0, %s100
      %s122 = sphi 0, %s124
      %s125 = sphi 0, %s122
      %s126 = sphi 0, %s125
      %s142 = sphi 0, %s126
      %s148 = sphi 0, %s150
      %s151 = sphi 0, %s148
      %s152 = sphi 0, %s151
      %s168 = sphi 0, %s152
      %s174 = sphi 0, %s176
      %s177 = sphi 0, %s174
      %s178 = sphi 0, %s177
      %s194 = sphi 0, %s178
      %s200 = sphi 0, %s202
      %s203 = sphi 0, %s200
      %s204 = sphi 0, %s203
      %s220 = sphi 0, %s204
      %s228 = sphi 0, %s230
      %s231 = sphi 0, %s228
      %s232 = sphi 0, %s231
      %s248 = sphi 0, %s232
      %s256 = sphi 0, %s258
      %s259 = sphi 0, %s256
      %s260 = sphi 0, %s259
      %s276 = sphi 0, %s260
      %s284 = sphi 0, %s286
      %s287 = sphi 0, %s284
      %s288 = sphi 0, %s287
      %s304 = sphi 0, %s288
    $region4: #{chrom_decoder_forward.1} parent=1 // loop_header_branch
      %25 = sbr.rel (%p23) target = $region8
    $region5: #{chrom_decoder_forward.1} parent=1 // loop_body
      %s27 = ssub.s32 %s22, 1
      %s28 = ssub.s32 %s22, 2
      %s35 = sadd.s32 1, %s30
      %p36 = scmp.ge.s32.totalorder %s35, 1
      %s37 = scalar_select %p36, 0, %s35
      %s38 = sadd.s32 1, %s29
      %s39 = scalar_select %p36, %s38, %s29
      %p40 = scmp.ge.s32.totalorder %s39, 2
      %s41 = scalar_select %p40, 0, %s39
      %s42 = ssub.s32 %s30, %s37
      %p43 = scmp.eq.s32.totalorder %s42, 0
      %s45 = sadd.s32 %s44, 1
      %s46 = scalar_select %p43, %s44, %s45
      %p49 = pneg %p43
      %p50 = scmp.eq.s32.totalorder %s22, 1
      %p51 = por %p49, %p50
      %p52 = scmp.ne.s32.totalorder %s44, %s47
      %p53 = scmp.eq.s32.totalorder %s22, 0
      %p54 = por %p52, %p53
      %p55 = scmp.ne.s32.totalorder %s44, %s47
      %p56 = scmp.eq.s32.totalorder %s27, 1
      %p57 = por %p55, %p56
      %p58 = scmp.ne.s32.totalorder %s47, %s48
      %p59 = scmp.eq.s32.totalorder %s27, 0
      %p60 = por %p58, %p59
      %p61 = scmp.ne.s32.totalorder %s47, %s48
      %p62 = scmp.eq.s32.totalorder %s28, 1
      %p63 = por %p61, %p62
      %p65 = scmp.ne.s32.totalorder %s48, %s64
      %p66 = scmp.eq.s32.totalorder %s28, 0
      %p67 = por %p65, %p66
      %s68 = ssub.s32 %s29, %s41
      %p69 = scmp.eq.s32.totalorder %s68, 0
      %s71 = sadd.s32 %s70, 1
      %s72 = scalar_select %p69, %s70, %s71
      %p75 = pneg %p69
      %p76 = scmp.eq.s32.totalorder %s22, 1
      %p77 = por %p75, %p76
      %p78 = scmp.ne.s32.totalorder %s70, %s73
      %p79 = scmp.eq.s32.totalorder %s22, 0
      %p80 = por %p78, %p79
      %p81 = scmp.ne.s32.totalorder %s70, %s73
      %p82 = scmp.eq.s32.totalorder %s27, 1
      %p83 = por %p81, %p82
      %p84 = scmp.ne.s32.totalorder %s73, %s74
      %p85 = scmp.eq.s32.totalorder %s27, 0
      %p86 = por %p84, %p85
      %p87 = scmp.ne.s32.totalorder %s73, %s74
      %p88 = scmp.eq.s32.totalorder %s28, 1
      %p89 = por %p87, %p88
      %p91 = scmp.ne.s32.totalorder %s74, %s90
      %p92 = scmp.eq.s32.totalorder %s28, 0
      %p93 = por %p91, %p92
      %s94 = ssub.s32 %s29, %s41
      %p95 = scmp.eq.s32.totalorder %s94, 0
      %s97 = sadd.s32 %s96, 1
      %s98 = scalar_select %p95, %s96, %s97
      %p101 = pneg %p95
      %p102 = scmp.eq.s32.totalorder %s22, 1
      %p103 = por %p101, %p102
      %p104 = scmp.ne.s32.totalorder %s96, %s99
      %p105 = scmp.eq.s32.totalorder %s22, 0
      %p106 = por %p104, %p105
      %p107 = scmp.ne.s32.totalorder %s96, %s99
      %p108 = scmp.eq.s32.totalorder %s27, 1
      %p109 = por %p107, %p108
      %p110 = scmp.ne.s32.totalorder %s99, %s100
      %p111 = scmp.eq.s32.totalorder %s27, 0
      %p112 = por %p110, %p111
      %p113 = scmp.ne.s32.totalorder %s99, %s100
      %p114 = scmp.eq.s32.totalorder %s28, 1
      %p115 = por %p113, %p114
      %p117 = scmp.ne.s32.totalorder %s100, %s116
      %p118 = scmp.eq.s32.totalorder %s28, 0
      %p119 = por %p117, %p118
      %s120 = ssub.s32 %s29, %s41
      %p121 = scmp.eq.s32.totalorder %s120, 0
      %s123 = sadd.s32 %s122, 1
      %s124 = scalar_select %p121, %s122, %s123
      %p127 = pneg %p121
      %p128 = scmp.eq.s32.totalorder %s22, 1
      %p129 = por %p127, %p128
      %p130 = scmp.ne.s32.totalorder %s122, %s125
      %p131 = scmp.eq.s32.totalorder %s22, 0
      %p132 = por %p130, %p131
      %p133 = scmp.ne.s32.totalorder %s122, %s125
      %p134 = scmp.eq.s32.totalorder %s27, 1
      %p135 = por %p133, %p134
      %p136 = scmp.ne.s32.totalorder %s125, %s126
      %p137 = scmp.eq.s32.totalorder %s27, 0
      %p138 = por %p136, %p137
      %p139 = scmp.ne.s32.totalorder %s125, %s126
      %p140 = scmp.eq.s32.totalorder %s28, 1
      %p141 = por %p139, %p140
      %p143 = scmp.ne.s32.totalorder %s126, %s142
      %p144 = scmp.eq.s32.totalorder %s28, 0
      %p145 = por %p143, %p144
      %s146 = ssub.s32 %s29, %s41
      %p147 = scmp.eq.s32.totalorder %s146, 0
      %s149 = sadd.s32 %s148, 1
      %s150 = scalar_select %p147, %s148, %s149
      %p153 = pneg %p147
      %p154 = scmp.eq.s32.totalorder %s22, 1
      %p155 = por %p153, %p154
      %p156 = scmp.ne.s32.totalorder %s148, %s151
      %p157 = scmp.eq.s32.totalorder %s22, 0
      %p158 = por %p156, %p157
      %p159 = scmp.ne.s32.totalorder %s148, %s151
      %p160 = scmp.eq.s32.totalorder %s27, 1
      %p161 = por %p159, %p160
      %p162 = scmp.ne.s32.totalorder %s151, %s152
      %p163 = scmp.eq.s32.totalorder %s27, 0
      %p164 = por %p162, %p163
      %p165 = scmp.ne.s32.totalorder %s151, %s152
      %p166 = scmp.eq.s32.totalorder %s28, 1
      %p167 = por %p165, %p166
      %p169 = scmp.ne.s32.totalorder %s152, %s168
      %p170 = scmp.eq.s32.totalorder %s28, 0
      %p171 = por %p169, %p170
      %s172 = ssub.s32 %s29, %s41
      %p173 = scmp.eq.s32.totalorder %s172, 0
      %s175 = sadd.s32 %s174, 1
      %s176 = scalar_select %p173, %s174, %s175
      %p179 = pneg %p173
      %p180 = scmp.eq.s32.totalorder %s22, 1
      %p181 = por %p179, %p180
      %p182 = scmp.ne.s32.totalorder %s174, %s177
      %p183 = scmp.eq.s32.totalorder %s22, 0
      %p184 = por %p182, %p183
      %p185 = scmp.ne.s32.totalorder %s174, %s177
      %p186 = scmp.eq.s32.totalorder %s27, 1
      %p187 = por %p185, %p186
      %p188 = scmp.ne.s32.totalorder %s177, %s178
      %p189 = scmp.eq.s32.totalorder %s27, 0
      %p190 = por %p188, %p189
      %p191 = scmp.ne.s32.totalorder %s177, %s178
      %p192 = scmp.eq.s32.totalorder %s28, 1
      %p193 = por %p191, %p192
      %p195 = scmp.ne.s32.totalorder %s178, %s194
      %p196 = scmp.eq.s32.totalorder %s28, 0
      %p197 = por %p195, %p196
      %s198 = ssub.s32 %s29, %s41
      %p199 = scmp.eq.s32.totalorder %s198, 0
      %s201 = sadd.s32 %s200, 1
      %s202 = scalar_select %p199, %s200, %s201
      %p205 = pneg %p199
      %p206 = scmp.eq.s32.totalorder %s22, 1
      %p207 = por %p205, %p206
      %p208 = scmp.ne.s32.totalorder %s200, %s203
      %p209 = scmp.eq.s32.totalorder %s22, 0
      %p210 = por %p208, %p209
      %p211 = scmp.ne.s32.totalorder %s200, %s203
      %p212 = scmp.eq.s32.totalorder %s27, 1
      %p213 = por %p211, %p212
      %p214 = scmp.ne.s32.totalorder %s203, %s204
      %p215 = scmp.eq.s32.totalorder %s27, 0
      %p216 = por %p214, %p215
      %p217 = scmp.ne.s32.totalorder %s203, %s204
      %p218 = scmp.eq.s32.totalorder %s28, 1
      %p219 = por %p217, %p218
      %p221 = scmp.ne.s32.totalorder %s204, %s220
      %p222 = scmp.eq.s32.totalorder %s28, 0
      %p223 = por %p221, %p222
      %s224 = ssub.s32 %s30, %s37
      %s225 = ssub.s32 %s29, %s41
      %s226 = sor.u32 %s224, %s225
      %p227 = scmp.eq.s32.totalorder %s226, 0
      %s229 = sadd.s32 %s228, 1
      %s230 = scalar_select %p227, %s228, %s229
      %p233 = pneg %p227
      %p234 = scmp.eq.s32.totalorder %s22, 1
      %p235 = por %p233, %p234
      %p236 = scmp.ne.s32.totalorder %s228, %s231
      %p237 = scmp.eq.s32.totalorder %s22, 0
      %p238 = por %p236, %p237
      %p239 = scmp.ne.s32.totalorder %s228, %s231
      %p240 = scmp.eq.s32.totalorder %s27, 1
      %p241 = por %p239, %p240
      %p242 = scmp.ne.s32.totalorder %s231, %s232
      %p243 = scmp.eq.s32.totalorder %s27, 0
      %p244 = por %p242, %p243
      %p245 = scmp.ne.s32.totalorder %s231, %s232
      %p246 = scmp.eq.s32.totalorder %s28, 1
      %p247 = por %p245, %p246
      %p249 = scmp.ne.s32.totalorder %s232, %s248
      %p250 = scmp.eq.s32.totalorder %s28, 0
      %p251 = por %p249, %p250
      %s252 = ssub.s32 %s30, %s37
      %s253 = ssub.s32 %s29, %s41
      %s254 = sor.u32 %s252, %s253
      %p255 = scmp.eq.s32.totalorder %s254, 0
      %s257 = sadd.s32 %s256, 1
      %s258 = scalar_select %p255, %s256, %s257
      %p261 = pneg %p255
      %p262 = scmp.eq.s32.totalorder %s22, 1
      %p263 = por %p261, %p262
      %p264 = scmp.ne.s32.totalorder %s256, %s259
      %p265 = scmp.eq.s32.totalorder %s22, 0
      %p266 = por %p264, %p265
      %p267 = scmp.ne.s32.totalorder %s256, %s259
      %p268 = scmp.eq.s32.totalorder %s27, 1
      %p269 = por %p267, %p268
      %p270 = scmp.ne.s32.totalorder %s259, %s260
      %p271 = scmp.eq.s32.totalorder %s27, 0
      %p272 = por %p270, %p271
      %p273 = scmp.ne.s32.totalorder %s259, %s260
      %p274 = scmp.eq.s32.totalorder %s28, 1
      %p275 = por %p273, %p274
      %p277 = scmp.ne.s32.totalorder %s260, %s276
      %p278 = scmp.eq.s32.totalorder %s28, 0
      %p279 = por %p277, %p278
      %s280 = ssub.s32 %s30, %s37
      %s281 = ssub.s32 %s29, %s41
      %s282 = sor.u32 %s280, %s281
      %p283 = scmp.eq.s32.totalorder %s282, 0
      %s285 = sadd.s32 %s284, 1
      %s286 = scalar_select %p283, %s284, %s285
      %p289 = pneg %p283
      %p290 = scmp.eq.s32.totalorder %s22, 1
      %p291 = por %p289, %p290
      %p292 = scmp.ne.s32.totalorder %s284, %s287
      %p293 = scmp.eq.s32.totalorder %s22, 0
      %p294 = por %p292, %p293
      %p295 = scmp.ne.s32.totalorder %s284, %s287
      %p296 = scmp.eq.s32.totalorder %s27, 1
      %p297 = por %p295, %p296
      %p298 = scmp.ne.s32.totalorder %s287, %s288
      %p299 = scmp.eq.s32.totalorder %s27, 0
      %p300 = por %p298, %p299
      %p301 = scmp.ne.s32.totalorder %s287, %s288
      %p302 = scmp.eq.s32.totalorder %s28, 1
      %p303 = por %p301, %p302
      %p305 = scmp.ne.s32.totalorder %s288, %s304
      %p306 = scmp.eq.s32.totalorder %s28, 0
      %p307 = por %p305, %p306
      %p308 = scmp.le.s32.totalorder 1, %s22
      %p309 = scmp.lt.s32.totalorder %s22, 3
      %p310 = pnand %p308, %p309
      %p311 = pneg %p310
      // Predicated region
      $region9: #{chrom_decoder_forward.1} parent=5 // pred_check
        _
      $region10: #{chrom_decoder_forward.1} parent=5 // pred_check_branch
        %313 = sbr.rel (%p310) target = $region12
      $region11: #{chrom_decoder_forward.1} parent=5 // pred_region
        %s314 = ssub.s32 %s22, 1
        // Predicated region
        $region13: #{chrom_decoder_forward.1} parent=11 // pred_check
          %p315 = pneg %p60
        $region14: #{chrom_decoder_forward.1} parent=11 // pred_check_branch
          %317 = sbr.rel (%p315) target = $region16
        $region15: #{chrom_decoder_forward.1} parent=11 // pred_region
          %p318 = scmp.lt.s32.totalorder %s32, 0
          %s319 = scalar_select %p318, %s32, 0
          %s320 = smul.addr %s319, 8
          %s321 = scalar_lea.vmem %s0, %s320
        $region16: #{chrom_decoder_forward.1} parent=11 // pred_fallthru
          _
      $region12: #{chrom_decoder_forward.1} parent=5 // pred_fallthru
        _
      %p322 = scmp.lt.s32.totalorder %s22, 2
      // Predicated region
      $region17: #{chrom_decoder_forward.1} parent=5 // pred_check
        %p323 = pneg %p322
      $region18: #{chrom_decoder_forward.1} parent=5 // pred_check_branch
        %325 = sbr.rel (%p323) target = $region20
      $region19: #{chrom_decoder_forward.1} parent=5 // pred_region
        // Predicated region
        $region21: #{chrom_decoder_forward.1} parent=19 // pred_check
          %p326 = pneg %p80
        $region22: #{chrom_decoder_forward.1} parent=19 // pred_check_branch
          %328 = sbr.rel (%p326) target = $region24
        $region23: #{chrom_decoder_forward.1} parent=19 // pred_region
          %s329 = sand.u32 %s70, 1
          %s330 = sand.u32 %s70, 1
          %s331 = smul.addr %s330, 32
          %s332 = scalar_lea.vmem [#allocation4], %s331
          %s333 = smul.addr %s29, 8
          %s334 = scalar_lea.vmem %s1, %s333
          // Predicated region
          $region25: #{chrom_decoder_forward.1} parent=23 // pred_check
            _
          $region26: #{chrom_decoder_forward.1} parent=23 // pred_check_branch
            %336 = sbr.rel (0) target = $region28
          $region27: #{chrom_decoder_forward.1} parent=23 // pred_region
            // Predicated region
            $region29: #{chrom_decoder_forward.1} parent=27 // pred_check
              _
            $region30: #{chrom_decoder_forward.1} parent=27 // pred_check_branch
              %338 = sbr.rel (0) target = $region32
            $region31: #{chrom_decoder_forward.1} parent=27 // pred_region
              // Predicated region
              $region44: #{chrom_decoder_forward.1} parent=31 // pred_check
                _
              $region45: #{chrom_decoder_forward.1} parent=31 // pred_check_branch
                %360 = sbr.rel (0) target = $region47
              $region46: #{chrom_decoder_forward.1} parent=31 // pred_region
                loop: start=0, step=1, limit=1
                $region48: #{chrom_decoder_forward.1} parent=46 // loop_pre_header
                  _
                $region49: #{chrom_decoder_forward.1} parent=46 // loop_header
                  %s362 = sphi 0, %s366
                  %p363 = scmp.ge.s32.totalorder %s362, 1
                  %s367 = sphi %s334, %s334
                  %s368 = sphi %s332, %s332
                $region50: #{chrom_decoder_forward.1} parent=46 // loop_header_branch
                  %365 = sbr.rel (%p363) target = $region54
                $region51: #{chrom_decoder_forward.1} parent=46 // loop_body
                  %v369 = vld [vmem:[%s367] sm:$0xff]
                  %370 = vst [vmem:[%s368] sm:$0xff] %v369
                  %v371 = vld [vmem:[%s367 + $0x10] sm:$0xff]
                  %372 = vst [vmem:[%s368 + $0x8] sm:$0xff] %v371
                  %v373 = vld [vmem:[%s367 + $0x20] sm:$0xff]
                  %374 = vst [vmem:[%s368 + $0x10] sm:$0xff] %v373
                  %v375 = vld [vmem:[%s367 + $0x30] sm:$0xff]
                  %376 = vst [vmem:[%s368 + $0x18] sm:$0xff] %v375
                $region52: #{chrom_decoder_forward.1} parent=46 // loop_footer
                  %s366 = sadd.s32 1, %s362
                $region53: #{chrom_decoder_forward.1} parent=46 // loop_footer_branch
                  %361 = sbr.rel target = $region49
                $region54: #{chrom_decoder_forward.1} parent=46 // loop_exit
                  _
              $region47: #{chrom_decoder_forward.1} parent=31 // pred_fallthru
                _
              // Predicated region
              $region55: #{chrom_decoder_forward.1} parent=31 // pred_check
                _
              $region56: #{chrom_decoder_forward.1} parent=31 // pred_check_branch
                %378 = sbr.rel target = $region58
              $region57: #{chrom_decoder_forward.1} parent=31 // pred_region
                _
              $region58: #{chrom_decoder_forward.1} parent=31 // pred_fallthru
                _
            $region32: #{chrom_decoder_forward.1} parent=27 // pred_fallthru
              _
            // Predicated region
            $region33: #{chrom_decoder_forward.1} parent=27 // pred_check
              _
            $region34: #{chrom_decoder_forward.1} parent=27 // pred_check_branch
              %340 = sbr.rel target = $region36
            $region35: #{chrom_decoder_forward.1} parent=27 // pred_region
              %s342 = ssub.s32 256, 1
              loop: start=0, step=1, limit=1
              $region37: #{chrom_decoder_forward.1} parent=35 // loop_pre_header
                _
              $region38: #{chrom_decoder_forward.1} parent=35 // loop_header
                %s344 = sphi 0, %s348
                %p345 = scmp.ge.s32.totalorder %s344, 1
                %s349 = sphi %s334, %s334
                %s350 = sphi %s332, %s332
              $region39: #{chrom_decoder_forward.1} parent=35 // loop_header_branch
                %347 = sbr.rel (%p345) target = $region43
              $region40: #{chrom_decoder_forward.1} parent=35 // loop_body
                %v351 = vld [vmem:[%s349] sm:%s342]
                %352 = vst [vmem:[%s350] sm:%s342] %v351
                %v353 = vld [vmem:[%s349 + $0x10] sm:%s342]
                %354 = vst [vmem:[%s350 + $0x8] sm:%s342] %v353
                %v355 = vld [vmem:[%s349 + $0x20] sm:%s342]
                %356 = vst [vmem:[%s350 + $0x10] sm:%s342] %v355
                %v357 = vld [vmem:[%s349 + $0x30] sm:%s342]
                %358 = vst [vmem:[%s350 + $0x18] sm:%s342] %v357
              $region41: #{chrom_decoder_forward.1} parent=35 // loop_footer
                %s348 = sadd.s32 1, %s344
              $region42: #{chrom_decoder_forward.1} parent=35 // loop_footer_branch
                %343 = sbr.rel target = $region38
              $region43: #{chrom_decoder_forward.1} parent=35 // loop_exit
                _
            $region36: #{chrom_decoder_forward.1} parent=27 // pred_fallthru
              _
          $region28: #{chrom_decoder_forward.1} parent=23 // pred_fallthru
            _
          %379 = vnop
        $region24: #{chrom_decoder_forward.1} parent=19 // pred_fallthru
          _
        // Predicated region
        $region59: #{chrom_decoder_forward.1} parent=19 // pred_check
          %p380 = pneg %p106
        $region60: #{chrom_decoder_forward.1} parent=19 // pred_check_branch
          %382 = sbr.rel (%p380) target = $region62
        $region61: #{chrom_decoder_forward.1} parent=19 // pred_region
          %p383 = scmp.lt.s32.totalorder %s29, 1
          %s384 = scalar_select %p383, %s29, 1
          %s385 = smul.addr %s384, 2
          %s386 = scalar_lea.vmem %s2, %s385
        $region62: #{chrom_decoder_forward.1} parent=19 // pred_fallthru
          _
        // Predicated region
        $region63: #{chrom_decoder_forward.1} parent=19 // pred_check
          %p387 = pneg %p132
        $region64: #{chrom_decoder_forward.1} parent=19 // pred_check_branch
          %389 = sbr.rel (%p387) target = $region66
        $region65: #{chrom_decoder_forward.1} parent=19 // pred_region
          %s390 = sand.u32 %s122, 1
          %s391 = sand.u32 %s122, 1
          %s392 = smul.addr %s391, 32
          %s393 = scalar_lea.vmem [#allocation5], %s392
          %s394 = smul.u32 2, %s29
          %s395 = smul.addr %s394, 8
          %s396 = scalar_lea.vmem %s3, %s395
          // Predicated region
          $region67: #{chrom_decoder_forward.1} parent=65 // pred_check
            _
          $region68: #{chrom_decoder_forward.1} parent=65 // pred_check_branch
            %398 = sbr.rel (0) target = $region70
          $region69: #{chrom_decoder_forward.1} parent=65 // pred_region
            // Predicated region
            $region71: #{chrom_decoder_forward.1} parent=69 // pred_check
              _
            $region72: #{chrom_decoder_forward.1} parent=69 // pred_check_branch
              %400 = sbr.rel (0) target = $region74
            $region73: #{chrom_decoder_forward.1} parent=69 // pred_region
              loop: start=0, step=1, limit=1
              $region75: #{chrom_decoder_forward.1} parent=73 // loop_pre_header
                _
              $region76: #{chrom_decoder_forward.1} parent=73 // loop_header
                %s402 = sphi 0, %s406
                %p403 = scmp.ge.s32.totalorder %s402, 1
                %s407 = sphi %s396, %s396
                %s408 = sphi %s393, %s393
              $region77: #{chrom_decoder_forward.1} parent=73 // loop_header_branch
                %405 = sbr.rel (%p403) target = $region81
              $region78: #{chrom_decoder_forward.1} parent=73 // loop_body
                %v409 = vld [vmem:[%s407] sm:$0xff]
                %410 = vst [vmem:[%s408] sm:$0xff] %v409
                %v411 = vld [vmem:[%s407 + $0x8] sm:$0xff]
                %412 = vst [vmem:[%s408 + $0x8] sm:$0xff] %v411
                %v413 = vld [vmem:[%s407 + $0x20] sm:$0xff]
                %414 = vst [vmem:[%s408 + $0x10] sm:$0xff] %v413
                %v415 = vld [vmem:[%s407 + $0x28] sm:$0xff]
                %416 = vst [vmem:[%s408 + $0x18] sm:$0xff] %v415
              $region79: #{chrom_decoder_forward.1} parent=73 // loop_footer
                %s406 = sadd.s32 1, %s402
              $region80: #{chrom_decoder_forward.1} parent=73 // loop_footer_branch
                %401 = sbr.rel target = $region76
              $region81: #{chrom_decoder_forward.1} parent=73 // loop_exit
                _
            $region74: #{chrom_decoder_forward.1} parent=69 // pred_fallthru
              _
            // Predicated region
            $region82: #{chrom_decoder_forward.1} parent=69 // pred_check
              _
            $region83: #{chrom_decoder_forward.1} parent=69 // pred_check_branch
              %418 = sbr.rel target = $region85
            $region84: #{chrom_decoder_forward.1} parent=69 // pred_region
              _
            $region85: #{chrom_decoder_forward.1} parent=69 // pred_fallthru
              _
          $region70: #{chrom_decoder_forward.1} parent=65 // pred_fallthru
            _
          %419 = vnop
        $region66: #{chrom_decoder_forward.1} parent=19 // pred_fallthru
          _
        // Predicated region
        $region86: #{chrom_decoder_forward.1} parent=19 // pred_check
          %p420 = pneg %p158
        $region87: #{chrom_decoder_forward.1} parent=19 // pred_check_branch
          %422 = sbr.rel (%p420) target = $region89
        $region88: #{chrom_decoder_forward.1} parent=19 // pred_region
          %s423 = smul.u32 2, %s29
          %p424 = scmp.lt.s32.totalorder %s423, 3
          %s425 = scalar_select %p424, %s423, 3
          %s426 = smul.addr %s425, 2
          %s427 = scalar_lea.vmem %s4, %s426
          %s428 = smul.u32 2, %s29
        $region89: #{chrom_decoder_forward.1} parent=19 // pred_fallthru
          _
        // Predicated region
        $region90: #{chrom_decoder_forward.1} parent=19 // pred_check
          %p429 = pneg %p184
        $region91: #{chrom_decoder_forward.1} parent=19 // pred_check_branch
          %431 = sbr.rel (%p429) target = $region93
        $region92: #{chrom_decoder_forward.1} parent=19 // pred_region
          %s432 = sand.u32 %s174, 1
          %s433 = sand.u32 %s174, 1
          %s434 = smul.addr %s433, 96
          %s435 = scalar_lea.vmem [#allocation6], %s434
          %s436 = smul.addr %s29, 8
          %s437 = scalar_lea.vmem %s5, %s436
          // Predicated region
          $region94: #{chrom_decoder_forward.1} parent=92 // pred_check
            _
          $region95: #{chrom_decoder_forward.1} parent=92 // pred_check_branch
            %439 = sbr.rel (0) target = $region97
          $region96: #{chrom_decoder_forward.1} parent=92 // pred_region
            // Predicated region
            $region98: #{chrom_decoder_forward.1} parent=96 // pred_check
              _
            $region99: #{chrom_decoder_forward.1} parent=96 // pred_check_branch
              %441 = sbr.rel (0) target = $region101
            $region100: #{chrom_decoder_forward.1} parent=96 // pred_region
              // Predicated region
              $region113: #{chrom_decoder_forward.1} parent=100 // pred_check
                _
              $region114: #{chrom_decoder_forward.1} parent=100 // pred_check_branch
                %479 = sbr.rel (0) target = $region116
              $region115: #{chrom_decoder_forward.1} parent=100 // pred_region
                loop: start=0, step=1, limit=1
                $region117: #{chrom_decoder_forward.1} parent=115 // loop_pre_header
                  _
                $region118: #{chrom_decoder_forward.1} parent=115 // loop_header
                  %s481 = sphi 0, %s485
                  %p482 = scmp.ge.s32.totalorder %s481, 1
                  %s486 = sphi %s437, %s437
                  %s487 = sphi %s435, %s435
                $region119: #{chrom_decoder_forward.1} parent=115 // loop_header_branch
                  %484 = sbr.rel (%p482) target = $region123
                $region120: #{chrom_decoder_forward.1} parent=115 // loop_body
                  %v488 = vld [vmem:[%s486] sm:$0xff]
                  %489 = vst [vmem:[%s487] sm:$0xff] %v488
                  %v490 = vld [vmem:[%s486 + $0x10] sm:$0xff]
                  %491 = vst [vmem:[%s487 + $0x8] sm:$0xff] %v490
                  %v492 = vld [vmem:[%s486 + $0x20] sm:$0xff]
                  %493 = vst [vmem:[%s487 + $0x10] sm:$0xff] %v492
                  %v494 = vld [vmem:[%s486 + $0x30] sm:$0xff]
                  %495 = vst [vmem:[%s487 + $0x18] sm:$0xff] %v494
                  %v496 = vld [vmem:[%s486 + $0x40] sm:$0xff]
                  %497 = vst [vmem:[%s487 + $0x20] sm:$0xff] %v496
                  %v498 = vld [vmem:[%s486 + $0x50] sm:$0xff]
                  %499 = vst [vmem:[%s487 + $0x28] sm:$0xff] %v498
                  %v500 = vld [vmem:[%s486 + $0x60] sm:$0xff]
                  %501 = vst [vmem:[%s487 + $0x30] sm:$0xff] %v500
                  %v502 = vld [vmem:[%s486 + $0x70] sm:$0xff]
                  %503 = vst [vmem:[%s487 + $0x38] sm:$0xff] %v502
                  %v504 = vld [vmem:[%s486 + $0x80] sm:$0xff]
                  %505 = vst [vmem:[%s487 + $0x40] sm:$0xff] %v504
                  %v506 = vld [vmem:[%s486 + $0x90] sm:$0xff]
                  %507 = vst [vmem:[%s487 + $0x48] sm:$0xff] %v506
                  %v508 = vld [vmem:[%s486 + $0xa0] sm:$0xff]
                  %509 = vst [vmem:[%s487 + $0x50] sm:$0xff] %v508
                  %v510 = vld [vmem:[%s486 + $0xb0] sm:$0xff]
                  %511 = vst [vmem:[%s487 + $0x58] sm:$0xff] %v510
                $region121: #{chrom_decoder_forward.1} parent=115 // loop_footer
                  %s485 = sadd.s32 1, %s481
                $region122: #{chrom_decoder_forward.1} parent=115 // loop_footer_branch
                  %480 = sbr.rel target = $region118
                $region123: #{chrom_decoder_forward.1} parent=115 // loop_exit
                  _
              $region116: #{chrom_decoder_forward.1} parent=100 // pred_fallthru
                _
              // Predicated region
              $region124: #{chrom_decoder_forward.1} parent=100 // pred_check
                _
              $region125: #{chrom_decoder_forward.1} parent=100 // pred_check_branch
                %513 = sbr.rel target = $region127
              $region126: #{chrom_decoder_forward.1} parent=100 // pred_region
                _
              $region127: #{chrom_decoder_forward.1} parent=100 // pred_fallthru
                _
            $region101: #{chrom_decoder_forward.1} parent=96 // pred_fallthru
              _
            // Predicated region
            $region102: #{chrom_decoder_forward.1} parent=96 // pred_check
              _
            $region103: #{chrom_decoder_forward.1} parent=96 // pred_check_branch
              %443 = sbr.rel target = $region105
            $region104: #{chrom_decoder_forward.1} parent=96 // pred_region
              %s445 = ssub.s32 256, 1
              loop: start=0, step=1, limit=1
              $region106: #{chrom_decoder_forward.1} parent=104 // loop_pre_header
                _
              $region107: #{chrom_decoder_forward.1} parent=104 // loop_header
                %s447 = sphi 0, %s451
                %p448 = scmp.ge.s32.totalorder %s447, 1
                %s452 = sphi %s437, %s437
                %s453 = sphi %s435, %s435
              $region108: #{chrom_decoder_forward.1} parent=104 // loop_header_branch
                %450 = sbr.rel (%p448) target = $region112
              $region109: #{chrom_decoder_forward.1} parent=104 // loop_body
                %v454 = vld [vmem:[%s452] sm:%s445]
                %455 = vst [vmem:[%s453] sm:%s445] %v454
                %v456 = vld [vmem:[%s452 + $0x10] sm:%s445]
                %457 = vst [vmem:[%s453 + $0x8] sm:%s445] %v456
                %v458 = vld [vmem:[%s452 + $0x20] sm:%s445]
                %459 = vst [vmem:[%s453 + $0x10] sm:%s445] %v458
                %v460 = vld [vmem:[%s452 + $0x30] sm:%s445]
                %461 = vst [vmem:[%s453 + $0x18] sm:%s445] %v460
                %v462 = vld [vmem:[%s452 + $0x40] sm:%s445]
                %463 = vst [vmem:[%s453 + $0x20] sm:%s445] %v462
                %v464 = vld [vmem:[%s452 + $0x50] sm:%s445]
                %465 = vst [vmem:[%s453 + $0x28] sm:%s445] %v464
                %v466 = vld [vmem:[%s452 + $0x60] sm:%s445]
                %467 = vst [vmem:[%s453 + $0x30] sm:%s445] %v466
                %v468 = vld [vmem:[%s452 + $0x70] sm:%s445]
                %469 = vst [vmem:[%s453 + $0x38] sm:%s445] %v468
                %v470 = vld [vmem:[%s452 + $0x80] sm:%s445]
                %471 = vst [vmem:[%s453 + $0x40] sm:%s445] %v470
                %v472 = vld [vmem:[%s452 + $0x90] sm:%s445]
                %473 = vst [vmem:[%s453 + $0x48] sm:%s445] %v472
                %v474 = vld [vmem:[%s452 + $0xa0] sm:%s445]
                %475 = vst [vmem:[%s453 + $0x50] sm:%s445] %v474
                %v476 = vld [vmem:[%s452 + $0xb0] sm:%s445]
                %477 = vst [vmem:[%s453 + $0x58] sm:%s445] %v476
              $region110: #{chrom_decoder_forward.1} parent=104 // loop_footer
                %s451 = sadd.s32 1, %s447
              $region111: #{chrom_decoder_forward.1} parent=104 // loop_footer_branch
                %446 = sbr.rel target = $region107
              $region112: #{chrom_decoder_forward.1} parent=104 // loop_exit
                _
            $region105: #{chrom_decoder_forward.1} parent=96 // pred_fallthru
              _
          $region97: #{chrom_decoder_forward.1} parent=92 // pred_fallthru
            _
          %514 = vnop
        $region93: #{chrom_decoder_forward.1} parent=19 // pred_fallthru
          _
        // Predicated region
        $region128: #{chrom_decoder_forward.1} parent=19 // pred_check
          %p515 = pneg %p210
        $region129: #{chrom_decoder_forward.1} parent=19 // pred_check_branch
          %517 = sbr.rel (%p515) target = $region131
        $region130: #{chrom_decoder_forward.1} parent=19 // pred_region
          %s518 = smul.u32 3, %s29
          %p519 = scmp.lt.s32.totalorder %s518, 5
          %s520 = scalar_select %p519, %s518, 5
          %s521 = scalar_lea.vmem %s6, %s520
          %s522 = smul.u32 3, %s29
        $region131: #{chrom_decoder_forward.1} parent=19 // pred_fallthru
          _
      $region20: #{chrom_decoder_forward.1} parent=5 // pred_fallthru
        _
      %p523 = scmp.le.s32.totalorder 1, %s22
      %p524 = scmp.lt.s32.totalorder %s22, 3
      %p525 = pnand %p523, %p524
      %p526 = pneg %p525
      // Predicated region
      $region132: #{chrom_decoder_forward.1} parent=5 // pred_check
        _
      $region133: #{chrom_decoder_forward.1} parent=5 // pred_check_branch
        %528 = sbr.rel (%p525) target = $region135
      $region134: #{chrom_decoder_forward.1} parent=5 // pred_region
        %s529 = ssub.s32 %s22, 1
        %s530 = sand.u32 %s73, 1
        %s531 = sand.u32 %s73, 1
        %s532 = smul.addr %s531, 32
        %s533 = scalar_lea.vmem [#allocation4], %s532
        // Predicated region
        $region136: #{chrom_decoder_forward.1} parent=134 // pred_check
          %p534 = pneg %p86
        $region137: #{chrom_decoder_forward.1} parent=134 // pred_check_branch
          %536 = sbr.rel (%p534) target = $region139
        $region138: #{chrom_decoder_forward.1} parent=134 // pred_region
          _
        $region139: #{chrom_decoder_forward.1} parent=134 // pred_fallthru
          _
        %s537 = sand.u32 %s125, 1
        %s538 = sand.u32 %s125, 1
        %s539 = smul.addr %s538, 32
        %s540 = scalar_lea.vmem [#allocation5], %s539
        // Predicated region
        $region140: #{chrom_decoder_forward.1} parent=134 // pred_check
          %p541 = pneg %p138
        $region141: #{chrom_decoder_forward.1} parent=134 // pred_check_branch
          %543 = sbr.rel (%p541) target = $region143
        $region142: #{chrom_decoder_forward.1} parent=134 // pred_region
          _
        $region143: #{chrom_decoder_forward.1} parent=134 // pred_fallthru
          _
        %s544 = sand.u32 %s177, 1
        %s545 = sand.u32 %s177, 1
        %s546 = smul.addr %s545, 96
        %s547 = scalar_lea.vmem [#allocation6], %s546
        // Predicated region
        $region144: #{chrom_decoder_forward.1} parent=134 // pred_check
          %p548 = pneg %p190
        $region145: #{chrom_decoder_forward.1} parent=134 // pred_check_branch
          %550 = sbr.rel (%p548) target = $region147
        $region146: #{chrom_decoder_forward.1} parent=134 // pred_region
          _
        $region147: #{chrom_decoder_forward.1} parent=134 // pred_fallthru
          _
        %p551 = scmp.lt.s32.totalorder %s32, 0
        %s552 = scalar_select %p551, %s32, 0
        %s553 = smul.addr %s552, 8
        %s554 = scalar_lea.vmem %s0, %s553
        %p555 = pneg %p60
        %p556 = pneg %p57
        %s557 = sand.u32 %s73, 1
        %s558 = sand.u32 %s73, 1
        %s559 = smul.addr %s558, 32
        %s560 = scalar_lea.vmem [#allocation4], %s559
        %p561 = pneg %p86
        %p562 = pneg %p83
        %p563 = scmp.lt.s32.totalorder %s31, 1
        %s564 = scalar_select %p563, %s31, 1
        %s565 = smul.addr %s564, 2
        %s566 = scalar_lea.vmem %s2, %s565
        %p567 = pneg %p112
        %p568 = pneg %p109
        %s569 = sand.u32 %s125, 1
        %s570 = sand.u32 %s125, 1
        %s571 = smul.addr %s570, 32
        %s572 = scalar_lea.vmem [#allocation5], %s571
        %p573 = pneg %p138
        %p574 = pneg %p135
        %s575 = smul.u32 2, %s31
        %p576 = scmp.lt.s32.totalorder %s575, 3
        %s577 = scalar_select %p576, %s575, 3
        %s578 = smul.addr %s577, 2
        %s579 = scalar_lea.vmem %s4, %s578
        %p580 = pneg %p164
        %p581 = pneg %p161
        %s582 = sand.u32 %s177, 1
        %s583 = sand.u32 %s177, 1
        %s584 = smul.addr %s583, 96
        %s585 = scalar_lea.vmem [#allocation6], %s584
        %p586 = pneg %p190
        %p587 = pneg %p187
        %s588 = smul.u32 3, %s31
        %p589 = scmp.lt.s32.totalorder %s588, 5
        %s590 = scalar_select %p589, %s588, 5
        %s591 = scalar_lea.vmem %s6, %s590
        %p592 = pneg %p216
        %p593 = pneg %p213
        %p594 = pneg %p244
        %p595 = pneg %p241
        %s596 = sand.u32 %s231, 1
        %s597 = scalar_lea.sflag [#allocation8], %s596
        %s598 = sand.u32 %s231, 1
        %s599 = smul.addr %s598, 8
        %s600 = scalar_lea.vmem [#allocation7], %s599
        %p601 = pneg %p272
        %p602 = pneg %p269
        %s603 = sand.u32 %s27, 1
        %s604 = scalar_lea.sflag [#allocation10], %s603
        %s605 = sand.u32 %s259, 1
        %s606 = smul.addr %s605, 8
        %s607 = scalar_lea.vmem [#allocation9], %s606
        %p608 = pneg %p300
        %p609 = pneg %p297
        %s610 = sand.u32 %s27, 1
        %s611 = scalar_lea.sflag [#allocation10], %s610
        %s612 = sand.u32 %s287, 1
        %s613 = smul.addr %s612, 8
        %s614 = scalar_lea.vmem [#allocation11], %s613
        %p615 = scmp.lt.s32.totalorder %s32, 0
        %s616 = scalar_select %p615, %s32, 0
        %s617 = smul.addr %s616, 8
        %s618 = scalar_lea.vmem %s0, %s617
        %p619 = scmp.lt.s32.totalorder %s31, 1
        %s620 = scalar_select %p619, %s31, 1
        %s621 = smul.addr %s620, 2
        %s622 = scalar_lea.vmem %s2, %s621
        %s623 = smul.u32 2, %s31
        %s624 = smul.u32 2, %s31
        %p625 = scmp.lt.s32.totalorder %s624, 3
        %s626 = scalar_select %p625, %s624, 3
        %s627 = smul.addr %s626, 2
        %s628 = scalar_lea.vmem %s4, %s627
        %s629 = smul.u32 2, %s31
        %s630 = smul.u32 3, %s31
        %p631 = scmp.lt.s32.totalorder %s630, 5
        %s632 = scalar_select %p631, %s630, 5
        %s633 = scalar_lea.vmem %s6, %s632
        %s634 = smul.u32 3, %s31
        %635 = vst [vmem:[#allocation2] sm:$0xff] 0.0
        %636 = vst [vmem:[#allocation2 + $0x8] sm:$0xff] 0.0
        %637 = vst [vmem:[#allocation2 + $0x10] sm:$0xff] 0.0
        %638 = vst [vmem:[#allocation2 + $0x18] sm:$0xff] 0.0
        %639 = vst [vmem:[#allocation2 + $0x20] sm:$0xff] 0.0
        %640 = vst [vmem:[#allocation2 + $0x28] sm:$0xff] 0.0
        %641 = vst [vmem:[#allocation2 + $0x30] sm:$0xff] 0.0
        %642 = vst [vmem:[#allocation2 + $0x38] sm:$0xff] 0.0
        %643 = vst [vmem:[#allocation2 + $0x40] sm:$0xff] 0.0
        %644 = vst [vmem:[#allocation2 + $0x48] sm:$0xff] 0.0
        %645 = vst [vmem:[#allocation2 + $0x50] sm:$0xff] 0.0
        %646 = vst [vmem:[#allocation2 + $0x58] sm:$0xff] 0.0
        %647 = vst [vmem:[#allocation2 + $0x60] sm:$0xff] 0.0
        %648 = vst [vmem:[#allocation2 + $0x68] sm:$0xff] 0.0
        %649 = vst [vmem:[#allocation2 + $0x70] sm:$0xff] 0.0
        %650 = vst [vmem:[#allocation2 + $0x78] sm:$0xff] 0.0
        %651 = vst [vmem:[#allocation2 + $0x80] sm:$0xff] 0.0
        %652 = vst [vmem:[#allocation2 + $0x88] sm:$0xff] 0.0
        %653 = vst [vmem:[#allocation2 + $0x90] sm:$0xff] 0.0
        %654 = vst [vmem:[#allocation2 + $0x98] sm:$0xff] 0.0
        %655 = vst [vmem:[#allocation2 + $0xa0] sm:$0xff] 0.0
        %656 = vst [vmem:[#allocation2 + $0xa8] sm:$0xff] 0.0
        %657 = vst [vmem:[#allocation2 + $0xb0] sm:$0xff] 0.0
        %658 = vst [vmem:[#allocation2 + $0xb8] sm:$0xff] 0.0
        %659 = vst [vmem:[#allocation2 + $0xc0] sm:$0xff] 0.0
        %660 = vst [vmem:[#allocation2 + $0xc8] sm:$0xff] 0.0
        %661 = vst [vmem:[#allocation2 + $0xd0] sm:$0xff] 0.0
        %662 = vst [vmem:[#allocation2 + $0xd8] sm:$0xff] 0.0
        %663 = vst [vmem:[#allocation2 + $0xe0] sm:$0xff] 0.0
        %664 = vst [vmem:[#allocation2 + $0xe8] sm:$0xff] 0.0
        %665 = vst [vmem:[#allocation2 + $0xf0] sm:$0xff] 0.0
        %666 = vst [vmem:[#allocation2 + $0xf8] sm:$0xff] 0.0
        %667 = vst [vmem:[#allocation3] sm:$0xff] 0.0
        %668 = vst [vmem:[#allocation3 + $0x8] sm:$0xff] 0.0
        %669 = vst [vmem:[#allocation3 + $0x10] sm:$0xff] 0.0
        %670 = vst [vmem:[#allocation3 + $0x18] sm:$0xff] 0.0
        %671 = vst [vmem:[#allocation3 + $0x20] sm:$0xff] 0.0
        %672 = vst [vmem:[#allocation3 + $0x28] sm:$0xff] 0.0
        %673 = vst [vmem:[#allocation3 + $0x30] sm:$0xff] 0.0
        %674 = vst [vmem:[#allocation3 + $0x38] sm:$0xff] 0.0
        %675 = vst [vmem:[#allocation3 + $0x40] sm:$0xff] 0.0
        %676 = vst [vmem:[#allocation3 + $0x48] sm:$0xff] 0.0
        %677 = vst [vmem:[#allocation3 + $0x50] sm:$0xff] 0.0
        %678 = vst [vmem:[#allocation3 + $0x58] sm:$0xff] 0.0
        %679 = vst [vmem:[#allocation3 + $0x60] sm:$0xff] 0.0
        %680 = vst [vmem:[#allocation3 + $0x68] sm:$0xff] 0.0
        %681 = vst [vmem:[#allocation3 + $0x70] sm:$0xff] 0.0
        %682 = vst [vmem:[#allocation3 + $0x78] sm:$0xff] 0.0
        %683 = vst [vmem:[#allocation3 + $0x80] sm:$0xff] 0.0
        %684 = vst [vmem:[#allocation3 + $0x88] sm:$0xff] 0.0
        %685 = vst [vmem:[#allocation3 + $0x90] sm:$0xff] 0.0
        %686 = vst [vmem:[#allocation3 + $0x98] sm:$0xff] 0.0
        %687 = vst [vmem:[#allocation3 + $0xa0] sm:$0xff] 0.0
        %688 = vst [vmem:[#allocation3 + $0xa8] sm:$0xff] 0.0
        %689 = vst [vmem:[#allocation3 + $0xb0] sm:$0xff] 0.0
        %690 = vst [vmem:[#allocation3 + $0xb8] sm:$0xff] 0.0
        %691 = vst [vmem:[#allocation3 + $0xc0] sm:$0xff] 0.0
        %692 = vst [vmem:[#allocation3 + $0xc8] sm:$0xff] 0.0
        %693 = vst [vmem:[#allocation3 + $0xd0] sm:$0xff] 0.0
        %694 = vst [vmem:[#allocation3 + $0xd8] sm:$0xff] 0.0
        %695 = vst [vmem:[#allocation3 + $0xe0] sm:$0xff] 0.0
        %696 = vst [vmem:[#allocation3 + $0xe8] sm:$0xff] 0.0
        %697 = vst [vmem:[#allocation3 + $0xf0] sm:$0xff] 0.0
        %698 = vst [vmem:[#allocation3 + $0xf8] sm:$0xff] 0.0
        %699 = vst [vmem:[#allocation3 + $0x100] sm:$0xff] 0.0
        %700 = vst [vmem:[#allocation3 + $0x108] sm:$0xff] 0.0
        %701 = vst [vmem:[#allocation3 + $0x110] sm:$0xff] 0.0
        %702 = vst [vmem:[#allocation3 + $0x118] sm:$0xff] 0.0
        %703 = vst [vmem:[#allocation3 + $0x120] sm:$0xff] 0.0
        %704 = vst [vmem:[#allocation3 + $0x128] sm:$0xff] 0.0
        %705 = vst [vmem:[#allocation3 + $0x130] sm:$0xff] 0.0
        %706 = vst [vmem:[#allocation3 + $0x138] sm:$0xff] 0.0
        %707 = vst [vmem:[#allocation3 + $0x140] sm:$0xff] 0.0
        %708 = vst [vmem:[#allocation3 + $0x148] sm:$0xff] 0.0
        %709 = vst [vmem:[#allocation3 + $0x150] sm:$0xff] 0.0
        %710 = vst [vmem:[#allocation3 + $0x158] sm:$0xff] 0.0
        %711 = vst [vmem:[#allocation3 + $0x160] sm:$0xff] 0.0
        %712 = vst [vmem:[#allocation3 + $0x168] sm:$0xff] 0.0
        %713 = vst [vmem:[#allocation3 + $0x170] sm:$0xff] 0.0
        %714 = vst [vmem:[#allocation3 + $0x178] sm:$0xff] 0.0
        %715 = vst [vmem:[#allocation3 + $0x180] sm:$0xff] 0.0
        %716 = vst [vmem:[#allocation3 + $0x188] sm:$0xff] 0.0
        %717 = vst [vmem:[#allocation3 + $0x190] sm:$0xff] 0.0
        %718 = vst [vmem:[#allocation3 + $0x198] sm:$0xff] 0.0
        %719 = vst [vmem:[#allocation3 + $0x1a0] sm:$0xff] 0.0
        %720 = vst [vmem:[#allocation3 + $0x1a8] sm:$0xff] 0.0
        %721 = vst [vmem:[#allocation3 + $0x1b0] sm:$0xff] 0.0
        %722 = vst [vmem:[#allocation3 + $0x1b8] sm:$0xff] 0.0
        %723 = vst [vmem:[#allocation3 + $0x1c0] sm:$0xff] 0.0
        %724 = vst [vmem:[#allocation3 + $0x1c8] sm:$0xff] 0.0
        %725 = vst [vmem:[#allocation3 + $0x1d0] sm:$0xff] 0.0
        %726 = vst [vmem:[#allocation3 + $0x1d8] sm:$0xff] 0.0
        %727 = vst [vmem:[#allocation3 + $0x1e0] sm:$0xff] 0.0
        %728 = vst [vmem:[#allocation3 + $0x1e8] sm:$0xff] 0.0
        %729 = vst [vmem:[#allocation3 + $0x1f0] sm:$0xff] 0.0
        %730 = vst [vmem:[#allocation3 + $0x1f8] sm:$0xff] 0.0
        %731 = vst [vmem:[#allocation3 + $0x200] sm:$0xff] 0.0
        %732 = vst [vmem:[#allocation3 + $0x208] sm:$0xff] 0.0
        %733 = vst [vmem:[#allocation3 + $0x210] sm:$0xff] 0.0
        %734 = vst [vmem:[#allocation3 + $0x218] sm:$0xff] 0.0
        %735 = vst [vmem:[#allocation3 + $0x220] sm:$0xff] 0.0
        %736 = vst [vmem:[#allocation3 + $0x228] sm:$0xff] 0.0
        %737 = vst [vmem:[#allocation3 + $0x230] sm:$0xff] 0.0
        %738 = vst [vmem:[#allocation3 + $0x238] sm:$0xff] 0.0
        %739 = vst [vmem:[#allocation3 + $0x240] sm:$0xff] 0.0
        %740 = vst [vmem:[#allocation3 + $0x248] sm:$0xff] 0.0
        %741 = vst [vmem:[#allocation3 + $0x250] sm:$0xff] 0.0
        %742 = vst [vmem:[#allocation3 + $0x258] sm:$0xff] 0.0
        %743 = vst [vmem:[#allocation3 + $0x260] sm:$0xff] 0.0
        %744 = vst [vmem:[#allocation3 + $0x268] sm:$0xff] 0.0
        %745 = vst [vmem:[#allocation3 + $0x270] sm:$0xff] 0.0
        %746 = vst [vmem:[#allocation3 + $0x278] sm:$0xff] 0.0
        %747 = vst [vmem:[#allocation3 + $0x280] sm:$0xff] 0.0
        %748 = vst [vmem:[#allocation3 + $0x288] sm:$0xff] 0.0
        %749 = vst [vmem:[#allocation3 + $0x290] sm:$0xff] 0.0
        %750 = vst [vmem:[#allocation3 + $0x298] sm:$0xff] 0.0
        %751 = vst [vmem:[#allocation3 + $0x2a0] sm:$0xff] 0.0
        %752 = vst [vmem:[#allocation3 + $0x2a8] sm:$0xff] 0.0
        %753 = vst [vmem:[#allocation3 + $0x2b0] sm:$0xff] 0.0
        %754 = vst [vmem:[#allocation3 + $0x2b8] sm:$0xff] 0.0
        %755 = vst [vmem:[#allocation3 + $0x2c0] sm:$0xff] 0.0
        %756 = vst [vmem:[#allocation3 + $0x2c8] sm:$0xff] 0.0
        %757 = vst [vmem:[#allocation3 + $0x2d0] sm:$0xff] 0.0
        %758 = vst [vmem:[#allocation3 + $0x2d8] sm:$0xff] 0.0
        %759 = vst [vmem:[#allocation3 + $0x2e0] sm:$0xff] 0.0
        %760 = vst [vmem:[#allocation3 + $0x2e8] sm:$0xff] 0.0
        %761 = vst [vmem:[#allocation3 + $0x2f0] sm:$0xff] 0.0
        %762 = vst [vmem:[#allocation3 + $0x2f8] sm:$0xff] 0.0
        %v763 = vld [vmem:[%s540] sm:$0xff]
        %v764 = vld [vmem:[%s540 + $0x10] sm:$0xff]
        %vm765 = vcmask 261120
        %766 = vst.msk [vmem:[#allocation2] sm:$0xff] %vm765, %v763
        %767 = vst.msk [vmem:[#allocation2 + $0x10] sm:$0xff] %vm765, %v764
        %v768 = vld [vmem:[%s547] sm:$0xff]
        %v769 = vld [vmem:[%s547 + $0x8] sm:$0xff]
        %v770 = vld [vmem:[%s547 + $0x10] sm:$0xff]
        %v771 = vld [vmem:[%s547 + $0x18] sm:$0xff]
        %vm772 = vcmask 130048
        %773 = vst.msk [vmem:[#allocation3] sm:$0xff] %vm772, %v768
        %774 = vst.msk [vmem:[#allocation3 + $0x18] sm:$0xff] %vm772, %v769
        %775 = vst.msk [vmem:[#allocation3 + $0x30] sm:$0xff] %vm772, %v770
        %776 = vst.msk [vmem:[#allocation3 + $0x48] sm:$0xff] %vm772, %v771
        %v777 = vld [vmem:[%s547 + $0x20] sm:$0xff]
        %v778 = vld [vmem:[%s547 + $0x28] sm:$0xff]
        %v779 = vld [vmem:[%s547 + $0x30] sm:$0xff]
        %v780 = vld [vmem:[%s547 + $0x38] sm:$0xff]
        %781 = vst.msk [vmem:[#allocation3 + $0x8] sm:$0xff] %vm772, %v777
        %782 = vst.msk [vmem:[#allocation3 + $0x20] sm:$0xff] %vm772, %v778
        %783 = vst.msk [vmem:[#allocation3 + $0x38] sm:$0xff] %vm772, %v779
        %784 = vst.msk [vmem:[#allocation3 + $0x50] sm:$0xff] %vm772, %v780
        %v785 = vld [vmem:[%s547 + $0x40] sm:$0xff]
        %v786 = vld [vmem:[%s547 + $0x48] sm:$0xff]
        %v787 = vld [vmem:[%s547 + $0x50] sm:$0xff]
        %v788 = vld [vmem:[%s547 + $0x58] sm:$0xff]
        %789 = vst.msk [vmem:[#allocation3 + $0x10] sm:$0xff] %vm772, %v785
        %790 = vst.msk [vmem:[#allocation3 + $0x28] sm:$0xff] %vm772, %v786
        %791 = vst.msk [vmem:[#allocation3 + $0x40] sm:$0xff] %vm772, %v787
        %792 = vst.msk [vmem:[#allocation3 + $0x58] sm:$0xff] %vm772, %v788
        %v793 = vld [vmem:[%s540] sm:$0xff]
        %v794 = vld [vmem:[%s540 + $0x10] sm:$0xff]
        %vm795 = vcmask 523520
        %796 = vst.msk [vmem:[#allocation2 + $0x20] sm:$0xff] %vm795, %v793
        %797 = vst.msk [vmem:[#allocation2 + $0x30] sm:$0xff] %vm795, %v794
        %v798 = vld [vmem:[%s547] sm:$0xff]
        %v799 = vld [vmem:[%s547 + $0x8] sm:$0xff]
        %v800 = vld [vmem:[%s547 + $0x10] sm:$0xff]
        %v801 = vld [vmem:[%s547 + $0x18] sm:$0xff]
        %vm802 = vcmask 261248
        %803 = vst.msk [vmem:[#allocation3 + $0x60] sm:$0xff] %vm802, %v798
        %804 = vst.msk [vmem:[#allocation3 + $0x78] sm:$0xff] %vm802, %v799
        %805 = vst.msk [vmem:[#allocation3 + $0x90] sm:$0xff] %vm802, %v800
        %806 = vst.msk [vmem:[#allocation3 + $0xa8] sm:$0xff] %vm802, %v801
        %v807 = vld [vmem:[%s547 + $0x20] sm:$0xff]
        %v808 = vld [vmem:[%s547 + $0x28] sm:$0xff]
        %v809 = vld [vmem:[%s547 + $0x30] sm:$0xff]
        %v810 = vld [vmem:[%s547 + $0x38] sm:$0xff]
        %811 = vst.msk [vmem:[#allocation3 + $0x68] sm:$0xff] %vm802, %v807
        %812 = vst.msk [vmem:[#allocation3 + $0x80] sm:$0xff] %vm802, %v808
        %813 = vst.msk [vmem:[#allocation3 + $0x98] sm:$0xff] %vm802, %v809
        %814 = vst.msk [vmem:[#allocation3 + $0xb0] sm:$0xff] %vm802, %v810
        %v815 = vld [vmem:[%s547 + $0x40] sm:$0xff]
        %v816 = vld [vmem:[%s547 + $0x48] sm:$0xff]
        %v817 = vld [vmem:[%s547 + $0x50] sm:$0xff]
        %v818 = vld [vmem:[%s547 + $0x58] sm:$0xff]
        %819 = vst.msk [vmem:[#allocation3 + $0x70] sm:$0xff] %vm802, %v815
        %820 = vst.msk [vmem:[#allocation3 + $0x88] sm:$0xff] %vm802, %v816
        %821 = vst.msk [vmem:[#allocation3 + $0xa0] sm:$0xff] %vm802, %v817
        %822 = vst.msk [vmem:[#allocation3 + $0xb8] sm:$0xff] %vm802, %v818
        %v823 = vld [vmem:[%s540] sm:$0xff]
        %v824 = vld [vmem:[%s540 + $0x10] sm:$0xff]
        %vm825 = vcmask 785920
        %826 = vst.msk [vmem:[#allocation2 + $0x40] sm:$0xff] %vm825, %v823
        %827 = vst.msk [vmem:[#allocation2 + $0x50] sm:$0xff] %vm825, %v824
        %v828 = vld [vmem:[%s547] sm:$0xff]
        %v829 = vld [vmem:[%s547 + $0x8] sm:$0xff]
        %v830 = vld [vmem:[%s547 + $0x10] sm:$0xff]
        %v831 = vld [vmem:[%s547 + $0x18] sm:$0xff]
        %vm832 = vcmask 392448
        %833 = vst.msk [vmem:[#allocation3 + $0xc0] sm:$0xff] %vm832, %v828
        %834 = vst.msk [vmem:[#allocation3 + $0xd8] sm:$0xff] %vm832, %v829
        %835 = vst.msk [vmem:[#allocation3 + $0xf0] sm:$0xff] %vm832, %v830
        %836 = vst.msk [vmem:[#allocation3 + $0x108] sm:$0xff] %vm832, %v831
        %v837 = vld [vmem:[%s547 + $0x20] sm:$0xff]
        %v838 = vld [vmem:[%s547 + $0x28] sm:$0xff]
        %v839 = vld [vmem:[%s547 + $0x30] sm:$0xff]
        %v840 = vld [vmem:[%s547 + $0x38] sm:$0xff]
        %841 = vst.msk [vmem:[#allocation3 + $0xc8] sm:$0xff] %vm832, %v837
        %842 = vst.msk [vmem:[#allocation3 + $0xe0] sm:$0xff] %vm832, %v838
        %843 = vst.msk [vmem:[#allocation3 + $0xf8] sm:$0xff] %vm832, %v839
        %844 = vst.msk [vmem:[#allocation3 + $0x110] sm:$0xff] %vm832, %v840
        %v845 = vld [vmem:[%s547 + $0x40] sm:$0xff]
        %v846 = vld [vmem:[%s547 + $0x48] sm:$0xff]
        %v847 = vld [vmem:[%s547 + $0x50] sm:$0xff]
        %v848 = vld [vmem:[%s547 + $0x58] sm:$0xff]
        %849 = vst.msk [vmem:[#allocation3 + $0xd0] sm:$0xff] %vm832, %v845
        %850 = vst.msk [vmem:[#allocation3 + $0xe8] sm:$0xff] %vm832, %v846
        %851 = vst.msk [vmem:[#allocation3 + $0x100] sm:$0xff] %vm832, %v847
        %852 = vst.msk [vmem:[#allocation3 + $0x118] sm:$0xff] %vm832, %v848
        %v853 = vld [vmem:[%s540] sm:$0xff]
        %v854 = vld [vmem:[%s540 + $0x10] sm:$0xff]
        %vm855 = vcmask 1048320
        %856 = vst.msk [vmem:[#allocation2 + $0x60] sm:$0xff] %vm855, %v853
        %857 = vst.msk [vmem:[#allocation2 + $0x70] sm:$0xff] %vm855, %v854
        %v858 = vld [vmem:[%s547] sm:$0xff]
        %v859 = vld [vmem:[%s547 + $0x8] sm:$0xff]
        %v860 = vld [vmem:[%s547 + $0x10] sm:$0xff]
        %v861 = vld [vmem:[%s547 + $0x18] sm:$0xff]
        %vm862 = vcmask 523648
        %863 = vst.msk [vmem:[#allocation3 + $0x120] sm:$0xff] %vm862, %v858
        %864 = vst.msk [vmem:[#allocation3 + $0x138] sm:$0xff] %vm862, %v859
        %865 = vst.msk [vmem:[#allocation3 + $0x150] sm:$0xff] %vm862, %v860
        %866 = vst.msk [vmem:[#allocation3 + $0x168] sm:$0xff] %vm862, %v861
        %v867 = vld [vmem:[%s547 + $0x20] sm:$0xff]
        %v868 = vld [vmem:[%s547 + $0x28] sm:$0xff]
        %v869 = vld [vmem:[%s547 + $0x30] sm:$0xff]
        %v870 = vld [vmem:[%s547 + $0x38] sm:$0xff]
        %871 = vst.msk [vmem:[#allocation3 + $0x128] sm:$0xff] %vm862, %v867
        %872 = vst.msk [vmem:[#allocation3 + $0x140] sm:$0xff] %vm862, %v868
        %873 = vst.msk [vmem:[#allocation3 + $0x158] sm:$0xff] %vm862, %v869
        %874 = vst.msk [vmem:[#allocation3 + $0x170] sm:$0xff] %vm862, %v870
        %v875 = vld [vmem:[%s547 + $0x40] sm:$0xff]
        %v876 = vld [vmem:[%s547 + $0x48] sm:$0xff]
        %v877 = vld [vmem:[%s547 + $0x50] sm:$0xff]
        %v878 = vld [vmem:[%s547 + $0x58] sm:$0xff]
        %879 = vst.msk [vmem:[#allocation3 + $0x130] sm:$0xff] %vm862, %v875
        %880 = vst.msk [vmem:[#allocation3 + $0x148] sm:$0xff] %vm862, %v876
        %881 = vst.msk [vmem:[#allocation3 + $0x160] sm:$0xff] %vm862, %v877
        %882 = vst.msk [vmem:[#allocation3 + $0x178] sm:$0xff] %vm862, %v878
        %v883 = vld [vmem:[%s540 + $0x8] sm:$0xff]
        %v884 = vld [vmem:[%s540 + $0x18] sm:$0xff]
        %885 = vst.msk [vmem:[#allocation2 + $0x88] sm:$0xff] %vm765, %v883
        %886 = vst.msk [vmem:[#allocation2 + $0x98] sm:$0xff] %vm765, %v884
        %v887 = vld [vmem:[%s547] sm:$0xff]
        %v888 = vld [vmem:[%s547 + $0x8] sm:$0xff]
        %v889 = vld [vmem:[%s547 + $0x10] sm:$0xff]
        %v890 = vld [vmem:[%s547 + $0x18] sm:$0xff]
        %vm891 = vcmask 654848
        %892 = vst.msk [vmem:[#allocation3 + $0x180] sm:$0xff] %vm891, %v887
        %893 = vst.msk [vmem:[#allocation3 + $0x198] sm:$0xff] %vm891, %v888
        %894 = vst.msk [vmem:[#allocation3 + $0x1b0] sm:$0xff] %vm891, %v889
        %895 = vst.msk [vmem:[#allocation3 + $0x1c8] sm:$0xff] %vm891, %v890
        %v896 = vld [vmem:[%s547 + $0x20] sm:$0xff]
        %v897 = vld [vmem:[%s547 + $0x28] sm:$0xff]
        %v898 = vld [vmem:[%s547 + $0x30] sm:$0xff]
        %v899 = vld [vmem:[%s547 + $0x38] sm:$0xff]
        %900 = vst.msk [vmem:[#allocation3 + $0x188] sm:$0xff] %vm891, %v896
        %901 = vst.msk [vmem:[#allocation3 + $0x1a0] sm:$0xff] %vm891, %v897
        %902 = vst.msk [vmem:[#allocation3 + $0x1b8] sm:$0xff] %vm891, %v898
        %903 = vst.msk [vmem:[#allocation3 + $0x1d0] sm:$0xff] %vm891, %v899
        %v904 = vld [vmem:[%s547 + $0x40] sm:$0xff]
        %v905 = vld [vmem:[%s547 + $0x48] sm:$0xff]
        %v906 = vld [vmem:[%s547 + $0x50] sm:$0xff]
        %v907 = vld [vmem:[%s547 + $0x58] sm:$0xff]
        %908 = vst.msk [vmem:[#allocation3 + $0x190] sm:$0xff] %vm891, %v904
        %909 = vst.msk [vmem:[#allocation3 + $0x1a8] sm:$0xff] %vm891, %v905
        %910 = vst.msk [vmem:[#allocation3 + $0x1c0] sm:$0xff] %vm891, %v906
        %911 = vst.msk [vmem:[#allocation3 + $0x1d8] sm:$0xff] %vm891, %v907
        %v912 = vld [vmem:[%s540 + $0x8] sm:$0xff]
        %v913 = vld [vmem:[%s540 + $0x18] sm:$0xff]
        %914 = vst.msk [vmem:[#allocation2 + $0xa8] sm:$0xff] %vm795, %v912
        %915 = vst.msk [vmem:[#allocation2 + $0xb8] sm:$0xff] %vm795, %v913
        %v916 = vld [vmem:[%s547] sm:$0xff]
        %v917 = vld [vmem:[%s547 + $0x8] sm:$0xff]
        %v918 = vld [vmem:[%s547 + $0x10] sm:$0xff]
        %v919 = vld [vmem:[%s547 + $0x18] sm:$0xff]
        %vm920 = vcmask 786048
        %921 = vst.msk [vmem:[#allocation3 + $0x1e0] sm:$0xff] %vm920, %v916
        %922 = vst.msk [vmem:[#allocation3 + $0x1f8] sm:$0xff] %vm920, %v917
        %923 = vst.msk [vmem:[#allocation3 + $0x210] sm:$0xff] %vm920, %v918
        %924 = vst.msk [vmem:[#allocation3 + $0x228] sm:$0xff] %vm920, %v919
        %v925 = vld [vmem:[%s547 + $0x20] sm:$0xff]
        %v926 = vld [vmem:[%s547 + $0x28] sm:$0xff]
        %v927 = vld [vmem:[%s547 + $0x30] sm:$0xff]
        %v928 = vld [vmem:[%s547 + $0x38] sm:$0xff]
        %929 = vst.msk [vmem:[#allocation3 + $0x1e8] sm:$0xff] %vm920, %v925
        %930 = vst.msk [vmem:[#allocation3 + $0x200] sm:$0xff] %vm920, %v926
        %931 = vst.msk [vmem:[#allocation3 + $0x218] sm:$0xff] %vm920, %v927
        %932 = vst.msk [vmem:[#allocation3 + $0x230] sm:$0xff] %vm920, %v928
        %v933 = vld [vmem:[%s547 + $0x40] sm:$0xff]
        %v934 = vld [vmem:[%s547 + $0x48] sm:$0xff]
        %v935 = vld [vmem:[%s547 + $0x50] sm:$0xff]
        %v936 = vld [vmem:[%s547 + $0x58] sm:$0xff]
        %937 = vst.msk [vmem:[#allocation3 + $0x1f0] sm:$0xff] %vm920, %v933
        %938 = vst.msk [vmem:[#allocation3 + $0x208] sm:$0xff] %vm920, %v934
        %939 = vst.msk [vmem:[#allocation3 + $0x220] sm:$0xff] %vm920, %v935
        %940 = vst.msk [vmem:[#allocation3 + $0x238] sm:$0xff] %vm920, %v936
        %v941 = vld [vmem:[%s540 + $0x8] sm:$0xff]
        %v942 = vld [vmem:[%s540 + $0x18] sm:$0xff]
        %943 = vst.msk [vmem:[#allocation2 + $0xc8] sm:$0xff] %vm825, %v941
        %944 = vst.msk [vmem:[#allocation2 + $0xd8] sm:$0xff] %vm825, %v942
        %v945 = vld [vmem:[%s547] sm:$0xff]
        %v946 = vld [vmem:[%s547 + $0x8] sm:$0xff]
        %v947 = vld [vmem:[%s547 + $0x10] sm:$0xff]
        %v948 = vld [vmem:[%s547 + $0x18] sm:$0xff]
        %vm949 = vcmask 917248
        %950 = vst.msk [vmem:[#allocation3 + $0x240] sm:$0xff] %vm949, %v945
        %951 = vst.msk [vmem:[#allocation3 + $0x258] sm:$0xff] %vm949, %v946
        %952 = vst.msk [vmem:[#allocation3 + $0x270] sm:$0xff] %vm949, %v947
        %953 = vst.msk [vmem:[#allocation3 + $0x288] sm:$0xff] %vm949, %v948
        %v954 = vld [vmem:[%s547 + $0x20] sm:$0xff]
        %v955 = vld [vmem:[%s547 + $0x28] sm:$0xff]
        %v956 = vld [vmem:[%s547 + $0x30] sm:$0xff]
        %v957 = vld [vmem:[%s547 + $0x38] sm:$0xff]
        %958 = vst.msk [vmem:[#allocation3 + $0x248] sm:$0xff] %vm949, %v954
        %959 = vst.msk [vmem:[#allocation3 + $0x260] sm:$0xff] %vm949, %v955
        %960 = vst.msk [vmem:[#allocation3 + $0x278] sm:$0xff] %vm949, %v956
        %961 = vst.msk [vmem:[#allocation3 + $0x290] sm:$0xff] %vm949, %v957
        %v962 = vld [vmem:[%s547 + $0x40] sm:$0xff]
        %v963 = vld [vmem:[%s547 + $0x48] sm:$0xff]
        %v964 = vld [vmem:[%s547 + $0x50] sm:$0xff]
        %v965 = vld [vmem:[%s547 + $0x58] sm:$0xff]
        %966 = vst.msk [vmem:[#allocation3 + $0x250] sm:$0xff] %vm949, %v962
        %967 = vst.msk [vmem:[#allocation3 + $0x268] sm:$0xff] %vm949, %v963
        %968 = vst.msk [vmem:[#allocation3 + $0x280] sm:$0xff] %vm949, %v964
        %969 = vst.msk [vmem:[#allocation3 + $0x298] sm:$0xff] %vm949, %v965
        %v970 = vld [vmem:[%s540 + $0x8] sm:$0xff]
        %v971 = vld [vmem:[%s540 + $0x18] sm:$0xff]
        %972 = vst.msk [vmem:[#allocation2 + $0xe8] sm:$0xff] %vm855, %v970
        %973 = vst.msk [vmem:[#allocation2 + $0xf8] sm:$0xff] %vm855, %v971
        %v974 = vld [vmem:[%s547] sm:$0xff]
        %v975 = vld [vmem:[%s547 + $0x8] sm:$0xff]
        %v976 = vld [vmem:[%s547 + $0x10] sm:$0xff]
        %v977 = vld [vmem:[%s547 + $0x18] sm:$0xff]
        %vm978 = vcmask 1048448
        %979 = vst.msk [vmem:[#allocation3 + $0x2a0] sm:$0xff] %vm978, %v974
        %980 = vst.msk [vmem:[#allocation3 + $0x2b8] sm:$0xff] %vm978, %v975
        %981 = vst.msk [vmem:[#allocation3 + $0x2d0] sm:$0xff] %vm978, %v976
        %982 = vst.msk [vmem:[#allocation3 + $0x2e8] sm:$0xff] %vm978, %v977
        %v983 = vld [vmem:[%s547 + $0x20] sm:$0xff]
        %v984 = vld [vmem:[%s547 + $0x28] sm:$0xff]
        %v985 = vld [vmem:[%s547 + $0x30] sm:$0xff]
        %v986 = vld [vmem:[%s547 + $0x38] sm:$0xff]
        %987 = vst.msk [vmem:[#allocation3 + $0x2a8] sm:$0xff] %vm978, %v983
        %988 = vst.msk [vmem:[#allocation3 + $0x2c0] sm:$0xff] %vm978, %v984
        %989 = vst.msk [vmem:[#allocation3 + $0x2d8] sm:$0xff] %vm978, %v985
        %990 = vst.msk [vmem:[#allocation3 + $0x2f0] sm:$0xff] %vm978, %v986
        %v991 = vld [vmem:[%s547 + $0x40] sm:$0xff]
        %v992 = vld [vmem:[%s547 + $0x48] sm:$0xff]
        %v993 = vld [vmem:[%s547 + $0x50] sm:$0xff]
        %v994 = vld [vmem:[%s547 + $0x58] sm:$0xff]
        %995 = vst.msk [vmem:[#allocation3 + $0x2b0] sm:$0xff] %vm978, %v991
        %996 = vst.msk [vmem:[#allocation3 + $0x2c8] sm:$0xff] %vm978, %v992
        %997 = vst.msk [vmem:[#allocation3 + $0x2e0] sm:$0xff] %vm978, %v993
        %998 = vst.msk [vmem:[#allocation3 + $0x2f8] sm:$0xff] %vm978, %v994
        %v999 = vld [vmem:[%s618] sm:$0xff]
        %v1000 = vld [vmem:[%s533] sm:$0xff]
        %v1001 = vld [vmem:[%s533 + $0x8] sm:$0xff]
        %v1002 = vld [vmem:[%s533 + $0x10] sm:$0xff]
        %v1003 = vld [vmem:[%s533 + $0x18] sm:$0xff]
        %v1004 = vld [vmem:[%s622] sm:$0x1]
        %v1005 = vperm.slane %v1004, 0
        %v1007 = vsel %vm765, %v999, 0
        %1009 = vmatpush.msra.mxu0 0.0
        %1010 = vmatpush.msra.mxu0 0.0
        %1011 = vmatpush.msra.mxu0 0.0
        %1012 = vmatpush.msra.mxu0 0.0
        %1013 = vmatpush.msra.mxu0 0.0
        %1014 = vmatpush.msra.mxu0 0.0
        %1015 = vmatpush.msra.mxu0 0.0
        %1016 = vmatpush.msra.mxu0 0.0
        %1017 = vmatpush.msra.mxu0 0.0
        %1018 = vmatpush.msra.mxu0 0.0
        %1019 = vmatpush.msra.mxu0 0.0
        %1020 = vmatpush.msra.mxu0 0.0
        %1021 = vmatpush.msra.mxu0 %v1003
        %1022 = vmatpush.msra.mxu0 %v1002
        %1023 = vmatpush.msra.mxu0 %v1001
        %1024 = vmatpush.msra.mxu0 %v1000
        %1025 = vmatmul.f32.gmra.mxu0 %v1007
        %v1026 = vpop.f32.mrf.mxu0
        %v1027 = vadd.f32 %v1005, %v1026
        %1028 = vdwg.mxu0
        %v1029 = vld [vmem:[%s622 + $0x1] sm:$0x1]
        %vm1030 = vcmp.ge.f32.partialorder %v1027, 0.0
        %v1031 = vperm.slane %v1029, 0
        %v1032 = vmul.f32 %v1031, %v1027
        %v1033 = vsel %vm1030, %v1027, %v1032
        %v1034 = vld [vmem:[#allocation2] sm:$0xff]
        %v1035 = vld [vmem:[#allocation2 + $0x8] sm:$0xff]
        %v1036 = vld [vmem:[#allocation2 + $0x10] sm:$0xff]
        %v1037 = vld [vmem:[#allocation2 + $0x18] sm:$0xff]
        %v1038 = vld [vmem:[#allocation2 + $0x20] sm:$0xff]
        %v1039 = vld [vmem:[#allocation2 + $0x28] sm:$0xff]
        %v1040 = vld [vmem:[#allocation2 + $0x30] sm:$0xff]
        %v1041 = vld [vmem:[#allocation2 + $0x38] sm:$0xff]
        %v1042 = vld [vmem:[#allocation2 + $0x40] sm:$0xff]
        %v1043 = vld [vmem:[#allocation2 + $0x48] sm:$0xff]
        %v1044 = vld [vmem:[#allocation2 + $0x50] sm:$0xff]
        %v1045 = vld [vmem:[#allocation2 + $0x58] sm:$0xff]
        %v1046 = vld [vmem:[#allocation2 + $0x60] sm:$0xff]
        %v1047 = vld [vmem:[#allocation2 + $0x68] sm:$0xff]
        %v1048 = vld [vmem:[#allocation2 + $0x70] sm:$0xff]
        %v1049 = vld [vmem:[#allocation2 + $0x78] sm:$0xff]
        %v1050 = vld [vmem:[#allocation2 + $0x80] sm:$0xff]
        %v1051 = vld [vmem:[#allocation2 + $0x88] sm:$0xff]
        %v1052 = vld [vmem:[#allocation2 + $0x90] sm:$0xff]
        %v1053 = vld [vmem:[#allocation2 + $0x98] sm:$0xff]
        %v1054 = vld [vmem:[#allocation2 + $0xa0] sm:$0xff]
        %v1055 = vld [vmem:[#allocation2 + $0xa8] sm:$0xff]
        %v1056 = vld [vmem:[#allocation2 + $0xb0] sm:$0xff]
        %v1057 = vld [vmem:[#allocation2 + $0xb8] sm:$0xff]
        %v1058 = vld [vmem:[#allocation2 + $0xc0] sm:$0xff]
        %v1059 = vld [vmem:[#allocation2 + $0xc8] sm:$0xff]
        %v1060 = vld [vmem:[#allocation2 + $0xd0] sm:$0xff]
        %v1061 = vld [vmem:[#allocation2 + $0xd8] sm:$0xff]
        %v1062 = vld [vmem:[#allocation2 + $0xe0] sm:$0xff]
        %v1063 = vld [vmem:[#allocation2 + $0xe8] sm:$0xff]
        %v1064 = vld [vmem:[#allocation2 + $0xf0] sm:$0xff]
        %v1065 = vld [vmem:[#allocation2 + $0xf8] sm:$0xff]
        %v1066 = vld [vmem:[%s628] ss:$2 sm:$0x3]
        %v1068 = vperm.slane %v1066, 0
        %v1069 = vperm.slane %v1066, 1
        %1072 = vmatpush.msra.mxu0 %v1064
        %1073 = vmatpush.msra.mxu0 %v1062
        %1074 = vmatpush.msra.mxu0 %v1060
        %1075 = vmatpush.msra.mxu0 %v1058
        %1076 = vmatpush.msra.mxu0 %v1056
        %1077 = vmatpush.msra.mxu0 %v1054
        %1078 = vmatpush.msra.mxu0 %v1052
        %1079 = vmatpush.msra.mxu0 %v1050
        %1080 = vmatpush.msra.mxu0 %v1048
        %1081 = vmatpush.msra.mxu0 %v1046
        %1082 = vmatpush.msra.mxu0 %v1044
        %1083 = vmatpush.msra.mxu0 %v1042
        %1084 = vmatpush.msra.mxu0 %v1040
        %1085 = vmatpush.msra.mxu0 %v1038
        %1086 = vmatpush.msra.mxu0 %v1036
        %1087 = vmatpush.msra.mxu0 %v1034
        %1088 = vmatmul.f32.gmra.mxu0 %v1033
        %v1089 = vpop.f32.mrf.mxu0
        %v1090 = vadd.f32 %v1068, %v1089
        %1091 = vdwg.mxu0
        %1092 = vmatpush.msra.mxu0 %v1065
        %1093 = vmatpush.msra.mxu0 %v1063
        %1094 = vmatpush.msra.mxu0 %v1061
        %1095 = vmatpush.msra.mxu0 %v1059
        %1096 = vmatpush.msra.mxu0 %v1057
        %1097 = vmatpush.msra.mxu0 %v1055
        %1098 = vmatpush.msra.mxu0 %v1053
        %1099 = vmatpush.msra.mxu0 %v1051
        %1100 = vmatpush.msra.mxu0 %v1049
        %1101 = vmatpush.msra.mxu0 %v1047
        %1102 = vmatpush.msra.mxu0 %v1045
        %1103 = vmatpush.msra.mxu0 %v1043
        %1104 = vmatpush.msra.mxu0 %v1041
        %1105 = vmatpush.msra.mxu0 %v1039
        %1106 = vmatpush.msra.mxu0 %v1037
        %1107 = vmatpush.msra.mxu0 %v1035
        %1108 = vmatmul.f32.gmra.mxu0 %v1033
        %v1109 = vpop.f32.mrf.mxu0
        %v1110 = vadd.f32 %v1069, %v1109
        %1111 = vdwg.mxu0
        %s1112 = scalar_lea.vmem %s628, 1
        %v1113 = vld [vmem:[%s1112] ss:$2 sm:$0x3]
        %vm1114 = vcmp.ge.f32.partialorder %v1090, 0.0
        %vm1115 = vcmp.ge.f32.partialorder %v1110, 0.0
        %v1117 = vperm.slane %v1113, 0
        %v1118 = vperm.slane %v1113, 1
        %v1121 = vmul.f32 %v1117, %v1090
        %v1122 = vmul.f32 %v1118, %v1110
        %v1123 = vsel %vm1114, %v1090, %v1121
        %v1124 = vsel %vm1115, %v1110, %v1122
        %v1125 = vld [vmem:[#allocation3] sm:$0xff]
        %v1126 = vld [vmem:[#allocation3 + $0x8] sm:$0xff]
        %v1127 = vld [vmem:[#allocation3 + $0x10] sm:$0xff]
        %v1128 = vld [vmem:[#allocation3 + $0x18] sm:$0xff]
        %v1129 = vld [vmem:[#allocation3 + $0x20] sm:$0xff]
        %v1130 = vld [vmem:[#allocation3 + $0x28] sm:$0xff]
        %v1131 = vld [vmem:[#allocation3 + $0x30] sm:$0xff]
        %v1132 = vld [vmem:[#allocation3 + $0x38] sm:$0xff]
        %v1133 = vld [vmem:[#allocation3 + $0x40] sm:$0xff]
        %v1134 = vld [vmem:[#allocation3 + $0x48] sm:$0xff]
        %v1135 = vld [vmem:[#allocation3 + $0x50] sm:$0xff]
        %v1136 = vld [vmem:[#allocation3 + $0x58] sm:$0xff]
        %v1137 = vld [vmem:[#allocation3 + $0x60] sm:$0xff]
        %v1138 = vld [vmem:[#allocation3 + $0x68] sm:$0xff]
        %v1139 = vld [vmem:[#allocation3 + $0x70] sm:$0xff]
        %v1140 = vld [vmem:[#allocation3 + $0x78] sm:$0xff]
        %v1141 = vld [vmem:[#allocation3 + $0x80] sm:$0xff]
        %v1142 = vld [vmem:[#allocation3 + $0x88] sm:$0xff]
        %v1143 = vld [vmem:[#allocation3 + $0x90] sm:$0xff]
        %v1144 = vld [vmem:[#allocation3 + $0x98] sm:$0xff]
        %v1145 = vld [vmem:[#allocation3 + $0xa0] sm:$0xff]
        %v1146 = vld [vmem:[#allocation3 + $0xa8] sm:$0xff]
        %v1147 = vld [vmem:[#allocation3 + $0xb0] sm:$0xff]
        %v1148 = vld [vmem:[#allocation3 + $0xb8] sm:$0xff]
        %v1149 = vld [vmem:[#allocation3 + $0xc0] sm:$0xff]
        %v1150 = vld [vmem:[#allocation3 + $0xc8] sm:$0xff]
        %v1151 = vld [vmem:[#allocation3 + $0xd0] sm:$0xff]
        %v1152 = vld [vmem:[#allocation3 + $0xd8] sm:$0xff]
        %v1153 = vld [vmem:[#allocation3 + $0xe0] sm:$0xff]
        %v1154 = vld [vmem:[#allocation3 + $0xe8] sm:$0xff]
        %v1155 = vld [vmem:[#allocation3 + $0xf0] sm:$0xff]
        %v1156 = vld [vmem:[#allocation3 + $0xf8] sm:$0xff]
        %v1157 = vld [vmem:[#allocation3 + $0x100] sm:$0xff]
        %v1158 = vld [vmem:[#allocation3 + $0x108] sm:$0xff]
        %v1159 = vld [vmem:[#allocation3 + $0x110] sm:$0xff]
        %v1160 = vld [vmem:[#allocation3 + $0x118] sm:$0xff]
        %v1161 = vld [vmem:[#allocation3 + $0x120] sm:$0xff]
        %v1162 = vld [vmem:[#allocation3 + $0x128] sm:$0xff]
        %v1163 = vld [vmem:[#allocation3 + $0x130] sm:$0xff]
        %v1164 = vld [vmem:[#allocation3 + $0x138] sm:$0xff]
        %v1165 = vld [vmem:[#allocation3 + $0x140] sm:$0xff]
        %v1166 = vld [vmem:[#allocation3 + $0x148] sm:$0xff]
        %v1167 = vld [vmem:[#allocation3 + $0x150] sm:$0xff]
        %v1168 = vld [vmem:[#allocation3 + $0x158] sm:$0xff]
        %v1169 = vld [vmem:[#allocation3 + $0x160] sm:$0xff]
        %v1170 = vld [vmem:[#allocation3 + $0x168] sm:$0xff]
        %v1171 = vld [vmem:[#allocation3 + $0x170] sm:$0xff]
        %v1172 = vld [vmem:[#allocation3 + $0x178] sm:$0xff]
        %v1173 = vld [vmem:[#allocation3 + $0x180] sm:$0xff]
        %v1174 = vld [vmem:[#allocation3 + $0x188] sm:$0xff]
        %v1175 = vld [vmem:[#allocation3 + $0x190] sm:$0xff]
        %v1176 = vld [vmem:[#allocation3 + $0x198] sm:$0xff]
        %v1177 = vld [vmem:[#allocation3 + $0x1a0] sm:$0xff]
        %v1178 = vld [vmem:[#allocation3 + $0x1a8] sm:$0xff]
        %v1179 = vld [vmem:[#allocation3 + $0x1b0] sm:$0xff]
        %v1180 = vld [vmem:[#allocation3 + $0x1b8] sm:$0xff]
        %v1181 = vld [vmem:[#allocation3 + $0x1c0] sm:$0xff]
        %v1182 = vld [vmem:[#allocation3 + $0x1c8] sm:$0xff]
        %v1183 = vld [vmem:[#allocation3 + $0x1d0] sm:$0xff]
        %v1184 = vld [vmem:[#allocation3 + $0x1d8] sm:$0xff]
        %v1185 = vld [vmem:[#allocation3 + $0x1e0] sm:$0xff]
        %v1186 = vld [vmem:[#allocation3 + $0x1e8] sm:$0xff]
        %v1187 = vld [vmem:[#allocation3 + $0x1f0] sm:$0xff]
        %v1188 = vld [vmem:[#allocation3 + $0x1f8] sm:$0xff]
        %v1189 = vld [vmem:[#allocation3 + $0x200] sm:$0xff]
        %v1190 = vld [vmem:[#allocation3 + $0x208] sm:$0xff]
        %v1191 = vld [vmem:[#allocation3 + $0x210] sm:$0xff]
        %v1192 = vld [vmem:[#allocation3 + $0x218] sm:$0xff]
        %v1193 = vld [vmem:[#allocation3 + $0x220] sm:$0xff]
        %v1194 = vld [vmem:[#allocation3 + $0x228] sm:$0xff]
        %v1195 = vld [vmem:[#allocation3 + $0x230] sm:$0xff]
        %v1196 = vld [vmem:[#allocation3 + $0x238] sm:$0xff]
        %v1197 = vld [vmem:[#allocation3 + $0x240] sm:$0xff]
        %v1198 = vld [vmem:[#allocation3 + $0x248] sm:$0xff]
        %v1199 = vld [vmem:[#allocation3 + $0x250] sm:$0xff]
        %v1200 = vld [vmem:[#allocation3 + $0x258] sm:$0xff]
        %v1201 = vld [vmem:[#allocation3 + $0x260] sm:$0xff]
        %v1202 = vld [vmem:[#allocation3 + $0x268] sm:$0xff]
        %v1203 = vld [vmem:[#allocation3 + $0x270] sm:$0xff]
        %v1204 = vld [vmem:[#allocation3 + $0x278] sm:$0xff]
        %v1205 = vld [vmem:[#allocation3 + $0x280] sm:$0xff]
        %v1206 = vld [vmem:[#allocation3 + $0x288] sm:$0xff]
        %v1207 = vld [vmem:[#allocation3 + $0x290] sm:$0xff]
        %v1208 = vld [vmem:[#allocation3 + $0x298] sm:$0xff]
        %v1209 = vld [vmem:[#allocation3 + $0x2a0] sm:$0xff]
        %v1210 = vld [vmem:[#allocation3 + $0x2a8] sm:$0xff]
        %v1211 = vld [vmem:[#allocation3 + $0x2b0] sm:$0xff]
        %v1212 = vld [vmem:[#allocation3 + $0x2b8] sm:$0xff]
        %v1213 = vld [vmem:[#allocation3 + $0x2c0] sm:$0xff]
        %v1214 = vld [vmem:[#allocation3 + $0x2c8] sm:$0xff]
        %v1215 = vld [vmem:[#allocation3 + $0x2d0] sm:$0xff]
        %v1216 = vld [vmem:[#allocation3 + $0x2d8] sm:$0xff]
        %v1217 = vld [vmem:[#allocation3 + $0x2e0] sm:$0xff]
        %v1218 = vld [vmem:[#allocation3 + $0x2e8] sm:$0xff]
        %v1219 = vld [vmem:[#allocation3 + $0x2f0] sm:$0xff]
        %v1220 = vld [vmem:[#allocation3 + $0x2f8] sm:$0xff]
        %v1221 = vld [vmem:[%s633] sm:$0x7]
        %v1223 = vperm.slane %v1221, 0
        %v1224 = vperm.slane %v1221, 1
        %v1225 = vperm.slane %v1221, 2
        %1229 = vmatpush.msra.mxu0 %v1170
        %1230 = vmatpush.msra.mxu0 %v1167
        %1231 = vmatpush.msra.mxu0 %v1164
        %1232 = vmatpush.msra.mxu0 %v1161
        %1233 = vmatpush.msra.mxu0 %v1158
        %1234 = vmatpush.msra.mxu0 %v1155
        %1235 = vmatpush.msra.mxu0 %v1152
        %1236 = vmatpush.msra.mxu0 %v1149
        %1237 = vmatpush.msra.mxu0 %v1146
        %1238 = vmatpush.msra.mxu0 %v1143
        %1239 = vmatpush.msra.mxu0 %v1140
        %1240 = vmatpush.msra.mxu0 %v1137
        %1241 = vmatpush.msra.mxu0 %v1134
        %1242 = vmatpush.msra.mxu0 %v1131
        %1243 = vmatpush.msra.mxu0 %v1128
        %1244 = vmatpush.msra.mxu0 %v1125
        %1245 = vmatmul.f32.gmra.mxu0 %v1123
        %v1246 = vpop.f32.mrf.mxu0
        %v1247 = vadd.f32 %v1223, %v1246
        %1248 = vdwg.mxu0
        %1249 = vmatpush.msra.mxu0 %v1218
        %1250 = vmatpush.msra.mxu0 %v1215
        %1251 = vmatpush.msra.mxu0 %v1212
        %1252 = vmatpush.msra.mxu0 %v1209
        %1253 = vmatpush.msra.mxu0 %v1206
        %1254 = vmatpush.msra.mxu0 %v1203
        %1255 = vmatpush.msra.mxu0 %v1200
        %1256 = vmatpush.msra.mxu0 %v1197
        %1257 = vmatpush.msra.mxu0 %v1194
        %1258 = vmatpush.msra.mxu0 %v1191
        %1259 = vmatpush.msra.mxu0 %v1188
        %1260 = vmatpush.msra.mxu0 %v1185
        %1261 = vmatpush.msra.mxu0 %v1182
        %1262 = vmatpush.msra.mxu0 %v1179
        %1263 = vmatpush.msra.mxu0 %v1176
        %1264 = vmatpush.msra.mxu0 %v1173
        %1265 = vmatmul.f32.gmra.mxu0 %v1124
        %v1266 = vpop.f32.mrf.mxu0
        %v1267 = vadd.f32 %v1247, %v1266
        %1268 = vdwg.mxu0
        %1269 = vmatpush.msra.mxu0 %v1171
        %1270 = vmatpush.msra.mxu0 %v1168
        %1271 = vmatpush.msra.mxu0 %v1165
        %1272 = vmatpush.msra.mxu0 %v1162
        %1273 = vmatpush.msra.mxu0 %v1159
        %1274 = vmatpush.msra.mxu0 %v1156
        %1275 = vmatpush.msra.mxu0 %v1153
        %1276 = vmatpush.msra.mxu0 %v1150
        %1277 = vmatpush.msra.mxu0 %v1147
        %1278 = vmatpush.msra.mxu0 %v1144
        %1279 = vmatpush.msra.mxu0 %v1141
        %1280 = vmatpush.msra.mxu0 %v1138
        %1281 = vmatpush.msra.mxu0 %v1135
        %1282 = vmatpush.msra.mxu0 %v1132
        %1283 = vmatpush.msra.mxu0 %v1129
        %1284 = vmatpush.msra.mxu0 %v1126
        %1285 = vmatmul.f32.gmra.mxu0 %v1123
        %v1286 = vpop.f32.mrf.mxu0
        %v1287 = vadd.f32 %v1224, %v1286
        %1288 = vdwg.mxu0
        %1289 = vmatpush.msra.mxu0 %v1219
        %1290 = vmatpush.msra.mxu0 %v1216
        %1291 = vmatpush.msra.mxu0 %v1213
        %1292 = vmatpush.msra.mxu0 %v1210
        %1293 = vmatpush.msra.mxu0 %v1207
        %1294 = vmatpush.msra.mxu0 %v1204
        %1295 = vmatpush.msra.mxu0 %v1201
        %1296 = vmatpush.msra.mxu0 %v1198
        %1297 = vmatpush.msra.mxu0 %v1195
        %1298 = vmatpush.msra.mxu0 %v1192
        %1299 = vmatpush.msra.mxu0 %v1189
        %1300 = vmatpush.msra.mxu0 %v1186
        %1301 = vmatpush.msra.mxu0 %v1183
        %1302 = vmatpush.msra.mxu0 %v1180
        %1303 = vmatpush.msra.mxu0 %v1177
        %1304 = vmatpush.msra.mxu0 %v1174
        %1305 = vmatmul.f32.gmra.mxu0 %v1124
        %v1306 = vpop.f32.mrf.mxu0
        %v1307 = vadd.f32 %v1287, %v1306
        %1308 = vdwg.mxu0
        %1309 = vmatpush.msra.mxu0 %v1172
        %1310 = vmatpush.msra.mxu0 %v1169
        %1311 = vmatpush.msra.mxu0 %v1166
        %1312 = vmatpush.msra.mxu0 %v1163
        %1313 = vmatpush.msra.mxu0 %v1160
        %1314 = vmatpush.msra.mxu0 %v1157
        %1315 = vmatpush.msra.mxu0 %v1154
        %1316 = vmatpush.msra.mxu0 %v1151
        %1317 = vmatpush.msra.mxu0 %v1148
        %1318 = vmatpush.msra.mxu0 %v1145
        %1319 = vmatpush.msra.mxu0 %v1142
        %1320 = vmatpush.msra.mxu0 %v1139
        %1321 = vmatpush.msra.mxu0 %v1136
        %1322 = vmatpush.msra.mxu0 %v1133
        %1323 = vmatpush.msra.mxu0 %v1130
        %1324 = vmatpush.msra.mxu0 %v1127
        %1325 = vmatmul.f32.gmra.mxu0 %v1123
        %v1326 = vpop.f32.mrf.mxu0
        %v1327 = vadd.f32 %v1225, %v1326
        %1328 = vdwg.mxu0
        %1329 = vmatpush.msra.mxu0 %v1220
        %1330 = vmatpush.msra.mxu0 %v1217
        %1331 = vmatpush.msra.mxu0 %v1214
        %1332 = vmatpush.msra.mxu0 %v1211
        %1333 = vmatpush.msra.mxu0 %v1208
        %1334 = vmatpush.msra.mxu0 %v1205
        %1335 = vmatpush.msra.mxu0 %v1202
        %1336 = vmatpush.msra.mxu0 %v1199
        %1337 = vmatpush.msra.mxu0 %v1196
        %1338 = vmatpush.msra.mxu0 %v1193
        %1339 = vmatpush.msra.mxu0 %v1190
        %1340 = vmatpush.msra.mxu0 %v1187
        %1341 = vmatpush.msra.mxu0 %v1184
        %1342 = vmatpush.msra.mxu0 %v1181
        %1343 = vmatpush.msra.mxu0 %v1178
        %1344 = vmatpush.msra.mxu0 %v1175
        %1345 = vmatmul.f32.gmra.mxu0 %v1124
        %v1346 = vpop.f32.mrf.mxu0
        %v1347 = vadd.f32 %v1327, %v1346
        %1348 = vdwg.mxu0
        %v1349 = vmul.f32 %v1267, 1.442695
        %v1350 = vpow.pop %v1349
        %1351 = vst [vmem:[%s600] sm:$0xff] %v1350
        %vm1352 = vcmp.gt.f32.partialorder %v1307, 20.0
        %v1353 = vmin.f32 %v1307, 20.0
        %v1354 = vmul.f32 %v1353, 1.442695
        %v1355 = vpow.pop %v1354
        %v1356 = vadd.f32 %v1355, 1.0
        %v1357 = vlog2.pop %v1356
        %v1358 = vmul.f32 %v1357, 0.6931472
        %v1359 = vmul.f32 -0.5, %v1355
        %v1360 = vadd.f32 %v1359, 1.0
        %v1361 = vmul.f32 %v1360, %v1355
        %v1362 = vand.u32 2147483647, %v1355
        %vm1363 = vcmp.lt.f32.partialorder %v1362, 0.0004427343
        %v1364 = vsel %vm1363, %v1361, %v1358
        %v1365 = vsel %vm1352, %v1307, %v1364
        %v1366 = vmax.f32 %v1365, 0.0001
        %1367 = vst [vmem:[%s607] sm:$0xff] %v1366
        %1368 = vst [vmem:[%s614] sm:$0xff] %v1347
        %s1369 = sand.u32 %s231, 1
        %s1370 = scalar_lea.sflag [#allocation8], %s1369
        %s1371 = sand.u32 %s231, 1
        %s1372 = smul.addr %s1371, 8
        %s1373 = scalar_lea.vmem [#allocation7], %s1372
        %s1374 = sand.u32 %s27, 1
        %s1375 = scalar_lea.sflag [#allocation10], %s1374
        %s1376 = sand.u32 %s259, 1
        %s1377 = smul.addr %s1376, 8
        %s1378 = scalar_lea.vmem [#allocation9], %s1377
        %s1379 = sand.u32 %s27, 1
        %s1380 = scalar_lea.sflag [#allocation10], %s1379
        %s1381 = sand.u32 %s287, 1
        %s1382 = smul.addr %s1381, 8
        %s1383 = scalar_lea.vmem [#allocation11], %s1382
        // Predicated region
        $region148: #{chrom_decoder_forward.1} parent=134 // pred_check
          %p1384 = pneg %p241
        $region149: #{chrom_decoder_forward.1} parent=134 // pred_check_branch
          %1386 = sbr.rel (%p1384) target = $region151
        $region150: #{chrom_decoder_forward.1} parent=134 // pred_region
          %1388 = vsyncadd %s1370, 0
          %s1389 = smul.addr %s32, 2
          %s1390 = sadd.s32 %s31, %s1389
          %s1391 = smul.addr %s1390, 8
          %s1392 = scalar_lea.hbm %s7, %s1391
          %s1394 = sshll.u32 %s1373, 4
          %s1395 = int_to_ptr.vmem [resolvable:$true] %s1394
          %s1396 = sshll.u32 %s1392, 4
          %s1397 = int_to_ptr.hbm [resolvable:$true] %s1396
          %1399 = dma.vmem_to_hbm [thread:$0]  %s1395, 128, %s1397, %s1370
        $region151: #{chrom_decoder_forward.1} parent=134 // pred_fallthru
          _
        // Predicated region
        $region152: #{chrom_decoder_forward.1} parent=134 // pred_check
          %p1400 = pneg %p269
        $region153: #{chrom_decoder_forward.1} parent=134 // pred_check_branch
          %1402 = sbr.rel (%p1400) target = $region155
        $region154: #{chrom_decoder_forward.1} parent=134 // pred_region
          %1404 = vsyncadd %s1375, 0
          %s1405 = smul.addr %s32, 2
          %s1406 = sadd.s32 %s31, %s1405
          %s1407 = smul.addr %s1406, 8
          %s1408 = scalar_lea.hbm %s8, %s1407
          %s1410 = sshll.u32 %s1378, 4
          %s1411 = int_to_ptr.vmem [resolvable:$true] %s1410
          %s1412 = sshll.u32 %s1408, 4
          %s1413 = int_to_ptr.hbm [resolvable:$true] %s1412
          %1415 = dma.vmem_to_hbm [thread:$0]  %s1411, 128, %s1413, %s1375
        $region155: #{chrom_decoder_forward.1} parent=134 // pred_fallthru
          _
        // Predicated region
        $region156: #{chrom_decoder_forward.1} parent=134 // pred_check
          %p1416 = pneg %p297
        $region157: #{chrom_decoder_forward.1} parent=134 // pred_check_branch
          %1418 = sbr.rel (%p1416) target = $region159
        $region158: #{chrom_decoder_forward.1} parent=134 // pred_region
          %1420 = vsyncadd %s1380, 0
          %s1421 = smul.addr %s32, 2
          %s1422 = sadd.s32 %s31, %s1421
          %s1423 = smul.addr %s1422, 8
          %s1424 = scalar_lea.hbm %s9, %s1423
          %s1426 = sshll.u32 %s1383, 4
          %s1427 = int_to_ptr.vmem [resolvable:$true] %s1426
          %s1428 = sshll.u32 %s1424, 4
          %s1429 = int_to_ptr.hbm [resolvable:$true] %s1428
          %1431 = dma.vmem_to_hbm [thread:$0]  %s1427, 128, %s1429, %s1380
        $region159: #{chrom_decoder_forward.1} parent=134 // pred_fallthru
          _
      $region135: #{chrom_decoder_forward.1} parent=5 // pred_fallthru
        _
      %p1432 = scmp.le.s32.totalorder 2, %s22
      // Predicated region
      $region160: #{chrom_decoder_forward.1} parent=5 // pred_check
        %p1433 = pneg %p1432
      $region161: #{chrom_decoder_forward.1} parent=5 // pred_check_branch
        %1435 = sbr.rel (%p1433) target = $region163
      $region162: #{chrom_decoder_forward.1} parent=5 // pred_region
        %s1436 = ssub.s32 %s22, 2
        // Predicated region
        $region164: #{chrom_decoder_forward.1} parent=162 // pred_check
          %p1437 = pneg %p247
        $region165: #{chrom_decoder_forward.1} parent=162 // pred_check_branch
          %1439 = sbr.rel (%p1437) target = $region167
        $region166: #{chrom_decoder_forward.1} parent=162 // pred_region
          %s1440 = sand.u32 %s232, 1
          %s1441 = scalar_lea.sflag [#allocation8], %s1440
          %s1442 = sand.u32 %s232, 1
          %s1443 = smul.addr %s1442, 8
          %s1444 = scalar_lea.vmem [#allocation7], %s1443
          %1446 = dma.done %s1441, 128
        $region167: #{chrom_decoder_forward.1} parent=162 // pred_fallthru
          _
        // Predicated region
        $region168: #{chrom_decoder_forward.1} parent=162 // pred_check
          %p1447 = pneg %p275
        $region169: #{chrom_decoder_forward.1} parent=162 // pred_check_branch
          %1449 = sbr.rel (%p1447) target = $region171
        $region170: #{chrom_decoder_forward.1} parent=162 // pred_region
          %s1450 = sand.u32 %s28, 1
          %s1451 = scalar_lea.sflag [#allocation10], %s1450
          %s1452 = sand.u32 %s260, 1
          %s1453 = smul.addr %s1452, 8
          %s1454 = scalar_lea.vmem [#allocation9], %s1453
          %1456 = dma.done %s1451, 128
        $region171: #{chrom_decoder_forward.1} parent=162 // pred_fallthru
          _
        // Predicated region
        $region172: #{chrom_decoder_forward.1} parent=162 // pred_check
          %p1457 = pneg %p303
        $region173: #{chrom_decoder_forward.1} parent=162 // pred_check_branch
          %1459 = sbr.rel (%p1457) target = $region175
        $region174: #{chrom_decoder_forward.1} parent=162 // pred_region
          %s1460 = sand.u32 %s28, 1
          %s1461 = scalar_lea.sflag [#allocation10], %s1460
          %s1462 = sand.u32 %s288, 1
          %s1463 = smul.addr %s1462, 8
          %s1464 = scalar_lea.vmem [#allocation11], %s1463
          %1466 = dma.done %s1461, 128
        $region175: #{chrom_decoder_forward.1} parent=162 // pred_fallthru
          _
      $region163: #{chrom_decoder_forward.1} parent=5 // pred_fallthru
        _
    $region6: #{chrom_decoder_forward.1} parent=1 // loop_footer
      %s26 = sadd.s32 1, %s22
    $region7: #{chrom_decoder_forward.1} parent=1 // loop_footer_branch
      %21 = sbr.rel target = $region3
    $region8: #{chrom_decoder_forward.1} parent=1 // loop_exit
      _
    %1467 = vsyncpa [#allocation8], 1
    %s1468 = scalar_lea.sflag [#allocation8], 1
    %1469 = vsyncpa %s1468, 1
    %1470 = vsyncpa [#allocation10], 1
    %s1471 = scalar_lea.sflag [#allocation10], 1
    %1472 = vsyncpa %s1471, 1

</llo_original>
